<compile_context>
chip_gen: v5e
topology: v5e:2x2
jax: 0.10.0
libtpu: 0.0.40
codegen_flags: <defaults>
</compile_context>

<pallas_src>
import math

import jax
import jax.numpy as jnp
from jax import lax
from jax.experimental import pallas as pl
from jax.experimental.pallas import tpu as pltpu


def _round_up(x, m):
    return ((x + m - 1) // m) * m


def _sigmoid(x):
    # Single EUP pass (tanh) instead of exp + reciprocal.
    return 0.5 * (jnp.tanh(0.5 * x) + 1.0)


def _make_encoder_kernel(L, S, TS, Bp, Ep, Hp, need_mask):
    """Builds the fused multi-layer LSTM kernel for one time chunk per grid step."""
    multi = L > 1
    unroll = max(1, min(TS, 8))

    def kernel(*refs):
        if multi:
            (emb_ref, wih0_ref, b0_ref, whh_ref, wih_rest_ref, b_rest_ref,
             h_out_ref, c_out_ref, xg_sc, seq_sc) = refs
        else:
            (emb_ref, wih0_ref, b0_ref, whh_ref,
             h_out_ref, c_out_ref, xg_sc) = refs
            wih_rest_ref = b_rest_ref = seq_sc = None

        t = pl.program_id(0)

        # (h, c) carry across time chunks lives in the resident output blocks.
        @pl.when(t == 0)
        def _():
            h_out_ref[...] = jnp.zeros_like(h_out_ref)
            c_out_ref[...] = jnp.zeros_like(c_out_ref)

        for l in range(L):  # static unroll over layers
            if l == 0:
                # Copy-free reshape: Bp % 8 == 0, Ep % 128 == 0.
                x_in = emb_ref[...].reshape(TS * Bp, Ep)
                w_in = wih0_ref[...]
                bias = b0_ref[...]
            else:
                # Copy-free reshape: Bp % 8 == 0, Hp % 128 == 0.
                x_in = seq_sc[...].reshape(TS * Bp, Hp)
                w_in = wih_rest_ref[l - 1]
                bias = b_rest_ref[l - 1]

            # Whole-chunk input projection: one MXU matmul, off the serial path.
            xg_sc[...] = (jnp.dot(x_in, w_in, preferred_element_type=jnp.float32)
                          + bias).reshape(TS, Bp, 4 * Hp)

            w_hh = whh_ref[l]             # hoisted: read once per layer/chunk
            write_seq = l < L - 1         # last layer's per-step h is unused

            def step(s, carry, w_hh=w_hh, write_seq=write_seq):
                h, c = carry
                gates = xg_sc[s] + jnp.dot(h, w_hh,
                                           preferred_element_type=jnp.float32)
                # Gate slices are full 128-lane tiles (Hp % 128 == 0).
                i_g = _sigmoid(gates[:, 0 * Hp:1 * Hp])
                f_g = _sigmoid(gates[:, 1 * Hp:2 * Hp])
                g_g = jnp.tanh(gates[:, 2 * Hp:3 * Hp])
                o_g = _sigmoid(gates[:, 3 * Hp:4 * Hp])
                c_new = f_g * c + i_g * g_g
                h_new = o_g * jnp.tanh(c_new)
                if need_mask:
                    valid = (t * TS + s) < S
                    h_new = jnp.where(valid, h_new, h)
                    c_new = jnp.where(valid, c_new, c)
                if write_seq:
                    seq_sc[s] = h_new     # VMEM-only, lane-dense
                return h_new, c_new

            h_n, c_n = lax.fori_loop(0, TS, step,
                                     (h_out_ref[l], c_out_ref[l]),
                                     unroll=unroll)
            h_out_ref[l] = h_n
            c_out_ref[l] = c_n

    return kernel


def _encoder_lstm_call(emb_p, wih0, b0, whh_all, wih_rest, b_rest, S, TS):
    """emb_p: (S_pad, Bp, Ep); whh_all: (L, Hp, 4Hp)."""
    S_pad, Bp, Ep = emb_p.shape
    L, Hp, G = whh_all.shape
    n_chunks = S_pad // TS
    multi = wih_rest is not None
    need_mask = S_pad != S

    in_specs = [
        pl.BlockSpec((TS, Bp, Ep), lambda t: (t, 0, 0)),   # embedded chunk
        pl.BlockSpec((Ep, G), lambda t: (0, 0)),           # W_ih layer 0
        pl.BlockSpec((1, G), lambda t: (0, 0)),            # bias layer 0
        pl.BlockSpec((L, Hp, G), lambda t: (0, 0, 0)),     # W_hh all layers
    ]
    args = [emb_p, wih0, b0, whh_all]
    if multi:
        in_specs += [
            pl.BlockSpec((L - 1, Hp, G), lambda t: (0, 0, 0)),
            pl.BlockSpec((L - 1, 1, G), lambda t: (0, 0, 0)),
        ]
        args += [wih_rest, b_rest]

    scratch = [pltpu.VMEM((TS, Bp, G), jnp.float32)]       # chunk input gates
    if multi:
        scratch.append(pltpu.VMEM((TS, Bp, Hp), jnp.float32))  # inter-layer seq

    # VMEM budget: double-buffered inputs + resident outputs + scratch + headroom.
    f32 = 4
    in_elems = TS * Bp * Ep + Ep * G + G + L * Hp * G
    if multi:
        in_elems += (L - 1) * Hp * G + (L - 1) * G
    out_elems = 2 * L * Bp * Hp
    scr_elems = TS * Bp * G + (TS * Bp * Hp if multi else 0)
    vmem_needed = (2 * (in_elems + out_elems) + scr_elems) * f32
    vmem_limit = int(min(64 * 1024 * 1024, vmem_needed + (8 << 20)))

    kernel = _make_encoder_kernel(L, S, TS, Bp, Ep, Hp, need_mask)

    h, c = pl.pallas_call(
        kernel,
        out_shape=(jax.ShapeDtypeStruct((L, Bp, Hp), jnp.float32),
                   jax.ShapeDtypeStruct((L, Bp, Hp), jnp.float32)),
        grid=(n_chunks,),
        in_specs=in_specs,
        out_specs=(pl.BlockSpec((L, Bp, Hp), lambda t: (0, 0, 0)),
                   pl.BlockSpec((L, Bp, Hp), lambda t: (0, 0, 0))),
        scratch_shapes=scratch,
        compiler_params=pltpu.CompilerParams(
            dimension_semantics=("arbitrary",),
            vmem_limit_bytes=vmem_limit),
    )(*args)
    return h, c


class EncoderPallas:
    """Pallas equivalent of the PyTorch Encoder (eval semantics)."""

    def __init__(self, input_dim, emb_dim, hid_dim, n_layers, dropout, key,
                 time_chunk=None):
        self.input_dim = input_dim
        self.emb_dim = emb_dim
        self.hid_dim = hid_dim
        self.n_layers = n_layers
        self.dropout = dropout          # unused at inference (see TODO above)
        self.time_chunk = time_chunk    # None -> auto policy

        H = hid_dim
        Hp = _round_up(H, 128)          # lane-dense gate blocks
        Ep = _round_up(emb_dim, 128)    # lane-dense embedding cols
        self.Hp, self.Ep = Hp, Ep

        keys = jax.random.split(key, 1 + 4 * n_layers)
        # nn.Embedding default init: N(0, 1)
        self.embedding = jax.random.normal(
            keys[0], (input_dim, emb_dim), dtype=jnp.float32)

        # nn.LSTM default init: U(-1/sqrt(H), 1/sqrt(H)) for all params.
        k = 1.0 / math.sqrt(H)
        raw = []
        for l in range(n_layers):
            in_dim = emb_dim if l == 0 else H
            kw = keys[1 + 4 * l: 1 + 4 * (l + 1)]
            w_ih = jax.random.uniform(kw[0], (4 * H, in_dim),
                                      minval=-k, maxval=k, dtype=jnp.float32)
            w_hh = jax.random.uniform(kw[1], (4 * H, H),
                                      minval=-k, maxval=k, dtype=jnp.float32)
            b_ih = jax.random.uniform(kw[2], (4 * H,),
                                      minval=-k, maxval=k, dtype=jnp.float32)
            b_hh = jax.random.uniform(kw[3], (4 * H,),
                                      minval=-k, maxval=k, dtype=jnp.float32)
            raw.append((w_ih, w_hh, b_ih, b_hh))
        self._raw_layers = raw  # kept for the pure-JAX reference check

        def pad_gate_cols(m):
            # (..., 4H) -> (..., 4Hp): pad each of the 4 gate blocks to Hp.
            parts = jnp.split(m, 4, axis=-1)
            pads = [(0, 0)] * (m.ndim - 1) + [(0, Hp - H)]
            return jnp.concatenate([jnp.pad(p, pads) for p in parts], axis=-1)

        # Layer 0: transposed, gate-padded W_ih (Ep, 4Hp) + combined bias.
        w_ih0, _, b_ih0, b_hh0 = raw[0]
        w0 = pad_gate_cols(jnp.transpose(w_ih0))                    # (E, 4Hp)
        self.w_ih0_t = jnp.pad(w0, ((0, Ep - emb_dim), (0, 0)))     # (Ep, 4Hp)
        self.b0 = pad_gate_cols((b_ih0 + b_hh0)[None, :])           # (1, 4Hp)

        whh_list, wih_rest, b_rest = [], [], []
        for l, (w_ih, w_hh, b_ih, b_hh) in enumerate(raw):
            whh_p = pad_gate_cols(jnp.transpose(w_hh))              # (H, 4Hp)
            whh_p = jnp.pad(whh_p, ((0, Hp - H), (0, 0)))           # (Hp, 4Hp)
            whh_list.append(whh_p)
            if l > 0:
                wih_p = pad_gate_cols(jnp.transpose(w_ih))          # (H, 4Hp)
                wih_p = jnp.pad(wih_p, ((0, Hp - H), (0, 0)))       # (Hp, 4Hp)
                wih_rest.append(wih_p)
                b_rest.append(pad_gate_cols((b_ih + b_hh)[None, :]))

        self.w_hh_all = jnp.stack(whh_list)                         # (L, Hp, 4Hp)
        if wih_rest:
            self.w_ih_rest = jnp.stack(wih_rest)                    # (L-1, Hp, 4Hp)
            self.b_rest = jnp.stack(b_rest)                         # (L-1, 1, 4Hp)
        else:  # n_layers == 1: no dummy inputs, no dead scratch
            self.w_ih_rest = None
            self.b_rest = None

    def _pick_time_chunk(self, S, Bp):
        if self.time_chunk is not None:
            return max(1, min(self.time_chunk, S))
        # Keep the per-chunk gate scratch around <= ~2 MiB.
        budget = (2 << 20) // (Bp * 4 * self.Hp * 4)
        return max(1, min(S, max(1, budget)))

    def __call__(self, src_batch):
        # src_batch: (seq_len, batch) int32
        S, B = src_batch.shape
        H, Hp, Ep = self.hid_dim, self.Hp, self.Ep
        Bp = max(_round_up(B, 8), 8)        # sublane-dense batch
        TS = self._pick_time_chunk(S, Bp)
        S_pad = _round_up(S, TS)

        # Embedding gather stays in XLA (jnp.take); everything else is fused.
        embedded = jnp.take(self.embedding, src_batch, axis=0)      # (S, B, E)
        emb_p = jnp.pad(embedded,
                        ((0, S_pad - S), (0, Bp - B), (0, Ep - self.emb_dim)))

        h_out, c_out = _encoder_lstm_call(
            emb_p, self.w_ih0_t, self.b0, self.w_hh_all,
            self.w_ih_rest, self.b_rest, S, TS)

        # Strip batch / hidden padding -> PyTorch shapes (n_layers, B, H).
        return h_out[:, :B, :H], c_out[:, :B, :H]


def _reference_forward(embedding, raw_layers, src_batch):
    """Pure-JAX reference implementing nn.LSTM eval semantics."""
    emb = jnp.take(embedding, src_batch, axis=0)
    S, B, _ = emb.shape
    x = emb
    hs, cs = [], []
    for (w_ih, w_hh, b_ih, b_hh) in raw_layers:
        H = w_hh.shape[1]

        def step(carry, x_t, w_ih=w_ih, w_hh=w_hh, b=b_ih + b_hh, H=H):
            h, c = carry
            gates = x_t @ w_ih.T + h @ w_hh.T + b
            i = jax.nn.sigmoid(gates[:, 0 * H:1 * H])
            f = jax.nn.sigmoid(gates[:, 1 * H:2 * H])
            g = jnp.tanh(gates[:, 2 * H:3 * H])
            o = jax.nn.sigmoid(gates[:, 3 * H:4 * H])
            c = f * c + i * g
            h = o * jnp.tanh(c)
            return (h, c), h

        init = (jnp.zeros((B, H), jnp.float32), jnp.zeros((B, H), jnp.float32))
        (h_n, c_n), outs = lax.scan(step, init, x)
        x = outs
        hs.append(h_n)
        cs.append(c_n)
    return jnp.stack(hs), jnp.stack(cs)


if __name__ == "__main__":
    INPUT_DIM = 50   # vocab size
    EMB_DIM = 32
    HID_DIM = 32
    N_LAYERS = 2
    DROPOUT = 0.5
    SEQ_LEN = 10     # not a multiple of the time chunk -> exercises masking
    BATCH = 4

    key = jax.random.PRNGKey(0)
    k_params, k_data = jax.random.split(key)

    # time_chunk=4 -> grid=(3,), exercising the time-tiled multi-chunk path.
    enc = EncoderPallas(INPUT_DIM, EMB_DIM, HID_DIM, N_LAYERS, DROPOUT,
                        k_params, time_chunk=4)

    src_batch = jax.random.randint(
        k_data, (SEQ_LEN, BATCH), minval=0, maxval=INPUT_DIM, dtype=jnp.int32)

    hidden, cell = enc(src_batch)
    jax.block_until_ready((hidden, cell))

    assert hidden.shape == (N_LAYERS, BATCH, HID_DIM)
    assert cell.shape == (N_LAYERS, BATCH, HID_DIM)

    # Numerical check against a pure-JAX nn.LSTM-equivalent reference.
    ref_h, ref_c = _reference_forward(enc.embedding, enc._raw_layers, src_batch)
    assert bool(jnp.allclose(hidden, ref_h, atol=2e-2)), \
        float(jnp.max(jnp.abs(hidden - ref_h)))
    assert bool(jnp.allclose(cell, ref_c, atol=2e-2)), \
        float(jnp.max(jnp.abs(cell - ref_c)))

    print("KERNEL_OK")
</pallas_src>

<mosaic_0001>
module attributes {stable_mosaic.version = 11 : i64} {
  func.func @kernel(%arg0: i32, %arg1: memref<4x8x128xf32, #tpu.memory_space<vmem>>, %arg2: memref<128x512xf32, #tpu.memory_space<vmem>>, %arg3: memref<1x512xf32, #tpu.memory_space<vmem>>, %arg4: memref<2x128x512xf32, #tpu.memory_space<vmem>>, %arg5: memref<1x128x512xf32, #tpu.memory_space<vmem>>, %arg6: memref<1x1x512xf32, #tpu.memory_space<vmem>>, %arg7: memref<2x8x128xf32, #tpu.memory_space<vmem>>, %arg8: memref<2x8x128xf32, #tpu.memory_space<vmem>>, %arg9: memref<4x8x512xf32, #tpu.memory_space<vmem>>, %arg10: memref<4x8x128xf32, #tpu.memory_space<vmem>>) attributes {dimension_semantics = [#tpu.dimension_semantics<arbitrary>], iteration_bounds = array<i64: 3>, scalar_prefetch = 0 : i64, scratch_operands = 2 : i64, tpu.core_type = #tpu.core_type<tc>, window_params = [{transform_indices = @transform_0, window_bounds = array<i64: 4, 8, 128>}, {pipeline_mode = #tpu.pipeline_mode<synchronous>, transform_indices = @transform_1, window_bounds = array<i64: 128, 512>}, {pipeline_mode = #tpu.pipeline_mode<synchronous>, transform_indices = @transform_2, window_bounds = array<i64: 1, 512>}, {pipeline_mode = #tpu.pipeline_mode<synchronous>, transform_indices = @transform_3, window_bounds = array<i64: 2, 128, 512>}, {pipeline_mode = #tpu.pipeline_mode<synchronous>, transform_indices = @transform_4, window_bounds = array<i64: 1, 128, 512>}, {pipeline_mode = #tpu.pipeline_mode<synchronous>, transform_indices = @transform_5, window_bounds = array<i64: 1, 1, 512>}, {pipeline_mode = #tpu.pipeline_mode<synchronous>, transform_indices = @transform_6, window_bounds = array<i64: 2, 8, 128>}, {pipeline_mode = #tpu.pipeline_mode<synchronous>, transform_indices = @transform_7, window_bounds = array<i64: 2, 8, 128>}]} {
    %c0_i32 = arith.constant 0 : i32
    %0 = arith.cmpi eq, %arg0, %c0_i32 : i32
    %1 = arith.extui %0 : i1 to i32
    %c0_i32_0 = arith.constant 0 : i32
    %2 = arith.cmpi ne, %1, %c0_i32_0 : i32
    scf.if %2 {
      %cst_177 = arith.constant 0.000000e+00 : f32
      %391 = vector.broadcast %cst_177 : f32 to vector<2x8x128xf32>
      %c0_178 = arith.constant 0 : index
      %c0_179 = arith.constant 0 : index
      %c0_180 = arith.constant 0 : index
      %392 = vector.load %arg7[%c0_178, %c0_179, %c0_180] : memref<2x8x128xf32, #tpu.memory_space<vmem>>, vector<2x8x128xf32>
      tpu.vector_store %arg7[%c0_178, %c0_179, %c0_180], %391 {strides = array<i32>} : memref<2x8x128xf32, #tpu.memory_space<vmem>>, vector<2x8x128xf32>,
      %cst_181 = arith.constant 0.000000e+00 : f32
      %393 = vector.broadcast %cst_181 : f32 to vector<2x8x128xf32>
      %c0_182 = arith.constant 0 : index
      %c0_183 = arith.constant 0 : index
      %c0_184 = arith.constant 0 : index
      %394 = vector.load %arg8[%c0_182, %c0_183, %c0_184] : memref<2x8x128xf32, #tpu.memory_space<vmem>>, vector<2x8x128xf32>
      tpu.vector_store %arg8[%c0_182, %c0_183, %c0_184], %393 {strides = array<i32>} : memref<2x8x128xf32, #tpu.memory_space<vmem>>, vector<2x8x128xf32>,
    } else {
    }
    %c0 = arith.constant 0 : index
    %c0_1 = arith.constant 0 : index
    %c0_2 = arith.constant 0 : index
    %3 = vector.load %arg1[%c0, %c0_1, %c0_2] : memref<4x8x128xf32, #tpu.memory_space<vmem>>, vector<4x8x128xf32>
    %4 = vector.shape_cast %3 : vector<4x8x128xf32> to vector<32x128xf32>
    %c0_3 = arith.constant 0 : index
    %c0_4 = arith.constant 0 : index
    %5 = vector.load %arg2[%c0_3, %c0_4] : memref<128x512xf32, #tpu.memory_space<vmem>>, vector<128x512xf32>
    %c0_5 = arith.constant 0 : index
    %c0_6 = arith.constant 0 : index
    %6 = vector.load %arg3[%c0_5, %c0_6] : memref<1x512xf32, #tpu.memory_space<vmem>>, vector<1x512xf32>
    %cst = arith.constant dense<0.000000e+00> : vector<32x512xf32>
    %7 = tpu.matmul %4, %5, %cst {dimension_numbers = #tpu.dot_dimension_numbers<[1], [0], [0], [1], [0, 0, 1, 1], [], []>} : vector<32x128xf32>, vector<128x512xf32>, vector<32x512xf32> -> vector<32x512xf32>
    %8 = vector.broadcast %6 : vector<1x512xf32> to vector<32x512xf32>
    %9 = arith.addf %7, %8 : vector<32x512xf32>
    %10 = vector.shape_cast %9 : vector<32x512xf32> to vector<4x8x512xf32>
    %c0_7 = arith.constant 0 : index
    %c0_8 = arith.constant 0 : index
    %c0_9 = arith.constant 0 : index
    %11 = vector.load %arg9[%c0_7, %c0_8, %c0_9] : memref<4x8x512xf32, #tpu.memory_space<vmem>>, vector<4x8x512xf32>
    tpu.vector_store %arg9[%c0_7, %c0_8, %c0_9], %10 {strides = array<i32>} : memref<4x8x512xf32, #tpu.memory_space<vmem>>, vector<4x8x512xf32>,
    %c0_10 = arith.constant 0 : index
    %c0_11 = arith.constant 0 : index
    %c0_12 = arith.constant 0 : index
    %12 = vector.load %arg4[%c0_10, %c0_11, %c0_12] : memref<2x128x512xf32, #tpu.memory_space<vmem>>, vector<1x128x512xf32>
    %13 = vector.shape_cast %12 : vector<1x128x512xf32> to vector<128x512xf32>
    %c0_13 = arith.constant 0 : index
    %c0_14 = arith.constant 0 : index
    %c0_15 = arith.constant 0 : index
    %14 = vector.load %arg7[%c0_13, %c0_14, %c0_15] : memref<2x8x128xf32, #tpu.memory_space<vmem>>, vector<1x8x128xf32>
    %15 = vector.shape_cast %14 : vector<1x8x128xf32> to vector<8x128xf32>
    %c0_16 = arith.constant 0 : index
    %c0_17 = arith.constant 0 : index
    %c0_18 = arith.constant 0 : index
    %16 = vector.load %arg8[%c0_16, %c0_17, %c0_18] : memref<2x8x128xf32, #tpu.memory_space<vmem>>, vector<1x8x128xf32>
    %17 = vector.shape_cast %16 : vector<1x8x128xf32> to vector<8x128xf32>
    %c0_i32_19 = arith.constant 0 : i32
    %18 = arith.index_cast %c0_i32_19 : i32 to index
    %c0_20 = arith.constant 0 : index
    %c0_21 = arith.constant 0 : index
    %19 = vector.load %arg9[%18, %c0_20, %c0_21] : memref<4x8x512xf32, #tpu.memory_space<vmem>>, vector<1x8x512xf32>
    %20 = vector.shape_cast %19 : vector<1x8x512xf32> to vector<8x512xf32>
    %cst_22 = arith.constant dense<0.000000e+00> : vector<8x512xf32>
    %21 = tpu.matmul %15, %13, %cst_22 {dimension_numbers = #tpu.dot_dimension_numbers<[1], [0], [0], [1], [0, 0, 1, 1], [], []>} : vector<8x128xf32>, vector<128x512xf32>, vector<8x512xf32> -> vector<8x512xf32>
    %22 = arith.addf %20, %21 : vector<8x512xf32>
    %23 = vector.extract_strided_slice %22 {offsets = [0, 0], sizes = [8, 128], strides = [1, 1]} : vector<8x512xf32> to vector<8x128xf32>
    %cst_23 = arith.constant 5.000000e-01 : f32
    %24 = vector.broadcast %cst_23 : f32 to vector<8x128xf32>
    %25 = arith.mulf %24, %23 : vector<8x128xf32>
    %26 = math.tanh %25 : vector<8x128xf32>
    %cst_24 = arith.constant 1.000000e+00 : f32
    %27 = vector.broadcast %cst_24 : f32 to vector<8x128xf32>
    %28 = arith.addf %26, %27 : vector<8x128xf32>
    %cst_25 = arith.constant 5.000000e-01 : f32
    %29 = vector.broadcast %cst_25 : f32 to vector<8x128xf32>
    %30 = arith.mulf %29, %28 : vector<8x128xf32>
    %31 = vector.extract_strided_slice %22 {offsets = [0, 128], sizes = [8, 128], strides = [1, 1]} : vector<8x512xf32> to vector<8x128xf32>
    %cst_26 = arith.constant 5.000000e-01 : f32
    %32 = vector.broadcast %cst_26 : f32 to vector<8x128xf32>
    %33 = arith.mulf %32, %31 : vector<8x128xf32>
    %34 = math.tanh %33 : vector<8x128xf32>
    %cst_27 = arith.constant 1.000000e+00 : f32
    %35 = vector.broadcast %cst_27 : f32 to vector<8x128xf32>
    %36 = arith.addf %34, %35 : vector<8x128xf32>
    %cst_28 = arith.constant 5.000000e-01 : f32
    %37 = vector.broadcast %cst_28 : f32 to vector<8x128xf32>
    %38 = arith.mulf %37, %36 : vector<8x128xf32>
    %39 = vector.extract_strided_slice %22 {offsets = [0, 256], sizes = [8, 128], strides = [1, 1]} : vector<8x512xf32> to vector<8x128xf32>
    %40 = math.tanh %39 : vector<8x128xf32>
    %41 = vector.extract_strided_slice %22 {offsets = [0, 384], sizes = [8, 128], strides = [1, 1]} : vector<8x512xf32> to vector<8x128xf32>
    %cst_29 = arith.constant 5.000000e-01 : f32
    %42 = vector.broadcast %cst_29 : f32 to vector<8x128xf32>
    %43 = arith.mulf %42, %41 : vector<8x128xf32>
    %44 = math.tanh %43 : vector<8x128xf32>
    %cst_30 = arith.constant 1.000000e+00 : f32
    %45 = vector.broadcast %cst_30 : f32 to vector<8x128xf32>
    %46 = arith.addf %44, %45 : vector<8x128xf32>
    %cst_31 = arith.constant 5.000000e-01 : f32
    %47 = vector.broadcast %cst_31 : f32 to vector<8x128xf32>
    %48 = arith.mulf %47, %46 : vector<8x128xf32>
    %49 = arith.mulf %38, %17 : vector<8x128xf32>
    %50 = arith.mulf %30, %40 : vector<8x128xf32>
    %51 = arith.addf %49, %50 : vector<8x128xf32>
    %52 = math.tanh %51 : vector<8x128xf32>
    %53 = arith.mulf %48, %52 : vector<8x128xf32>
    %c4_i32 = arith.constant 4 : i32
    %54 = arith.muli %arg0, %c4_i32 : i32
    %55 = arith.addi %54, %c0_i32_19 : i32
    %c10_i32 = arith.constant 10 : i32
    %56 = arith.cmpi slt, %55, %c10_i32 : i32
    %57 = arith.select %56, %53, %15 : vector<8x128xf32>
    %58 = arith.select %56, %51, %17 : vector<8x128xf32>
    %59 = arith.index_cast %c0_i32_19 : i32 to index
    %c0_32 = arith.constant 0 : index
    %c0_33 = arith.constant 0 : index
    %60 = vector.load %arg10[%59, %c0_32, %c0_33] : memref<4x8x128xf32, #tpu.memory_space<vmem>>, vector<1x8x128xf32>
    %61 = vector.shape_cast %60 : vector<1x8x128xf32> to vector<8x128xf32>
    %62 = vector.shape_cast %57 : vector<8x128xf32> to vector<1x8x128xf32>
    tpu.vector_store %arg10[%59, %c0_32, %c0_33], %62 {strides = array<i32>} : memref<4x8x128xf32, #tpu.memory_space<vmem>>, vector<1x8x128xf32>,
    %c1_i32 = arith.constant 1 : i32
    %63 = arith.index_cast %c1_i32 : i32 to index
    %c0_34 = arith.constant 0 : index
    %c0_35 = arith.constant 0 : index
    %64 = vector.load %arg9[%63, %c0_34, %c0_35] : memref<4x8x512xf32, #tpu.memory_space<vmem>>, vector<1x8x512xf32>
    %65 = vector.shape_cast %64 : vector<1x8x512xf32> to vector<8x512xf32>
    %cst_36 = arith.constant dense<0.000000e+00> : vector<8x512xf32>
    %66 = tpu.matmul %57, %13, %cst_36 {dimension_numbers = #tpu.dot_dimension_numbers<[1], [0], [0], [1], [0, 0, 1, 1], [], []>} : vector<8x128xf32>, vector<128x512xf32>, vector<8x512xf32> -> vector<8x512xf32>
    %67 = arith.addf %65, %66 : vector<8x512xf32>
    %68 = vector.extract_strided_slice %67 {offsets = [0, 0], sizes = [8, 128], strides = [1, 1]} : vector<8x512xf32> to vector<8x128xf32>
    %cst_37 = arith.constant 5.000000e-01 : f32
    %69 = vector.broadcast %cst_37 : f32 to vector<8x128xf32>
    %70 = arith.mulf %69, %68 : vector<8x128xf32>
    %71 = math.tanh %70 : vector<8x128xf32>
    %cst_38 = arith.constant 1.000000e+00 : f32
    %72 = vector.broadcast %cst_38 : f32 to vector<8x128xf32>
    %73 = arith.addf %71, %72 : vector<8x128xf32>
    %cst_39 = arith.constant 5.000000e-01 : f32
    %74 = vector.broadcast %cst_39 : f32 to vector<8x128xf32>
    %75 = arith.mulf %74, %73 : vector<8x128xf32>
    %76 = vector.extract_strided_slice %67 {offsets = [0, 128], sizes = [8, 128], strides = [1, 1]} : vector<8x512xf32> to vector<8x128xf32>
    %cst_40 = arith.constant 5.000000e-01 : f32
    %77 = vector.broadcast %cst_40 : f32 to vector<8x128xf32>
    %78 = arith.mulf %77, %76 : vector<8x128xf32>
    %79 = math.tanh %78 : vector<8x128xf32>
    %cst_41 = arith.constant 1.000000e+00 : f32
    %80 = vector.broadcast %cst_41 : f32 to vector<8x128xf32>
    %81 = arith.addf %79, %80 : vector<8x128xf32>
    %cst_42 = arith.constant 5.000000e-01 : f32
    %82 = vector.broadcast %cst_42 : f32 to vector<8x128xf32>
    %83 = arith.mulf %82, %81 : vector<8x128xf32>
    %84 = vector.extract_strided_slice %67 {offsets = [0, 256], sizes = [8, 128], strides = [1, 1]} : vector<8x512xf32> to vector<8x128xf32>
    %85 = math.tanh %84 : vector<8x128xf32>
    %86 = vector.extract_strided_slice %67 {offsets = [0, 384], sizes = [8, 128], strides = [1, 1]} : vector<8x512xf32> to vector<8x128xf32>
    %cst_43 = arith.constant 5.000000e-01 : f32
    %87 = vector.broadcast %cst_43 : f32 to vector<8x128xf32>
    %88 = arith.mulf %87, %86 : vector<8x128xf32>
    %89 = math.tanh %88 : vector<8x128xf32>
    %cst_44 = arith.constant 1.000000e+00 : f32
    %90 = vector.broadcast %cst_44 : f32 to vector<8x128xf32>
    %91 = arith.addf %89, %90 : vector<8x128xf32>
    %cst_45 = arith.constant 5.000000e-01 : f32
    %92 = vector.broadcast %cst_45 : f32 to vector<8x128xf32>
    %93 = arith.mulf %92, %91 : vector<8x128xf32>
    %94 = arith.mulf %83, %58 : vector<8x128xf32>
    %95 = arith.mulf %75, %85 : vector<8x128xf32>
    %96 = arith.addf %94, %95 : vector<8x128xf32>
    %97 = math.tanh %96 : vector<8x128xf32>
    %98 = arith.mulf %93, %97 : vector<8x128xf32>
    %c4_i32_46 = arith.constant 4 : i32
    %99 = arith.muli %arg0, %c4_i32_46 : i32
    %100 = arith.addi %99, %c1_i32 : i32
    %c10_i32_47 = arith.constant 10 : i32
    %101 = arith.cmpi slt, %100, %c10_i32_47 : i32
    %102 = arith.select %101, %98, %57 : vector<8x128xf32>
    %103 = arith.select %101, %96, %58 : vector<8x128xf32>
    %104 = arith.index_cast %c1_i32 : i32 to index
    %c0_48 = arith.constant 0 : index
    %c0_49 = arith.constant 0 : index
    %105 = vector.load %arg10[%104, %c0_48, %c0_49] : memref<4x8x128xf32, #tpu.memory_space<vmem>>, vector<1x8x128xf32>
    %106 = vector.shape_cast %105 : vector<1x8x128xf32> to vector<8x128xf32>
    %107 = vector.shape_cast %102 : vector<8x128xf32> to vector<1x8x128xf32>
    tpu.vector_store %arg10[%104, %c0_48, %c0_49], %107 {strides = array<i32>} : memref<4x8x128xf32, #tpu.memory_space<vmem>>, vector<1x8x128xf32>,
    %c2_i32 = arith.constant 2 : i32
    %108 = arith.index_cast %c2_i32 : i32 to index
    %c0_50 = arith.constant 0 : index
    %c0_51 = arith.constant 0 : index
    %109 = vector.load %arg9[%108, %c0_50, %c0_51] : memref<4x8x512xf32, #tpu.memory_space<vmem>>, vector<1x8x512xf32>
    %110 = vector.shape_cast %109 : vector<1x8x512xf32> to vector<8x512xf32>
    %cst_52 = arith.constant dense<0.000000e+00> : vector<8x512xf32>
    %111 = tpu.matmul %102, %13, %cst_52 {dimension_numbers = #tpu.dot_dimension_numbers<[1], [0], [0], [1], [0, 0, 1, 1], [], []>} : vector<8x128xf32>, vector<128x512xf32>, vector<8x512xf32> -> vector<8x512xf32>
    %112 = arith.addf %110, %111 : vector<8x512xf32>
    %113 = vector.extract_strided_slice %112 {offsets = [0, 0], sizes = [8, 128], strides = [1, 1]} : vector<8x512xf32> to vector<8x128xf32>
    %cst_53 = arith.constant 5.000000e-01 : f32
    %114 = vector.broadcast %cst_53 : f32 to vector<8x128xf32>
    %115 = arith.mulf %114, %113 : vector<8x128xf32>
    %116 = math.tanh %115 : vector<8x128xf32>
    %cst_54 = arith.constant 1.000000e+00 : f32
    %117 = vector.broadcast %cst_54 : f32 to vector<8x128xf32>
    %118 = arith.addf %116, %117 : vector<8x128xf32>
    %cst_55 = arith.constant 5.000000e-01 : f32
    %119 = vector.broadcast %cst_55 : f32 to vector<8x128xf32>
    %120 = arith.mulf %119, %118 : vector<8x128xf32>
    %121 = vector.extract_strided_slice %112 {offsets = [0, 128], sizes = [8, 128], strides = [1, 1]} : vector<8x512xf32> to vector<8x128xf32>
    %cst_56 = arith.constant 5.000000e-01 : f32
    %122 = vector.broadcast %cst_56 : f32 to vector<8x128xf32>
    %123 = arith.mulf %122, %121 : vector<8x128xf32>
    %124 = math.tanh %123 : vector<8x128xf32>
    %cst_57 = arith.constant 1.000000e+00 : f32
    %125 = vector.broadcast %cst_57 : f32 to vector<8x128xf32>
    %126 = arith.addf %124, %125 : vector<8x128xf32>
    %cst_58 = arith.constant 5.000000e-01 : f32
    %127 = vector.broadcast %cst_58 : f32 to vector<8x128xf32>
    %128 = arith.mulf %127, %126 : vector<8x128xf32>
    %129 = vector.extract_strided_slice %112 {offsets = [0, 256], sizes = [8, 128], strides = [1, 1]} : vector<8x512xf32> to vector<8x128xf32>
    %130 = math.tanh %129 : vector<8x128xf32>
    %131 = vector.extract_strided_slice %112 {offsets = [0, 384], sizes = [8, 128], strides = [1, 1]} : vector<8x512xf32> to vector<8x128xf32>
    %cst_59 = arith.constant 5.000000e-01 : f32
    %132 = vector.broadcast %cst_59 : f32 to vector<8x128xf32>
    %133 = arith.mulf %132, %131 : vector<8x128xf32>
    %134 = math.tanh %133 : vector<8x128xf32>
    %cst_60 = arith.constant 1.000000e+00 : f32
    %135 = vector.broadcast %cst_60 : f32 to vector<8x128xf32>
    %136 = arith.addf %134, %135 : vector<8x128xf32>
    %cst_61 = arith.constant 5.000000e-01 : f32
    %137 = vector.broadcast %cst_61 : f32 to vector<8x128xf32>
    %138 = arith.mulf %137, %136 : vector<8x128xf32>
    %139 = arith.mulf %128, %103 : vector<8x128xf32>
    %140 = arith.mulf %120, %130 : vector<8x128xf32>
    %141 = arith.addf %139, %140 : vector<8x128xf32>
    %142 = math.tanh %141 : vector<8x128xf32>
    %143 = arith.mulf %138, %142 : vector<8x128xf32>
    %c4_i32_62 = arith.constant 4 : i32
    %144 = arith.muli %arg0, %c4_i32_62 : i32
    %145 = arith.addi %144, %c2_i32 : i32
    %c10_i32_63 = arith.constant 10 : i32
    %146 = arith.cmpi slt, %145, %c10_i32_63 : i32
    %147 = arith.select %146, %143, %102 : vector<8x128xf32>
    %148 = arith.select %146, %141, %103 : vector<8x128xf32>
    %149 = arith.index_cast %c2_i32 : i32 to index
    %c0_64 = arith.constant 0 : index
    %c0_65 = arith.constant 0 : index
    %150 = vector.load %arg10[%149, %c0_64, %c0_65] : memref<4x8x128xf32, #tpu.memory_space<vmem>>, vector<1x8x128xf32>
    %151 = vector.shape_cast %150 : vector<1x8x128xf32> to vector<8x128xf32>
    %152 = vector.shape_cast %147 : vector<8x128xf32> to vector<1x8x128xf32>
    tpu.vector_store %arg10[%149, %c0_64, %c0_65], %152 {strides = array<i32>} : memref<4x8x128xf32, #tpu.memory_space<vmem>>, vector<1x8x128xf32>,
    %c3_i32 = arith.constant 3 : i32
    %153 = arith.index_cast %c3_i32 : i32 to index
    %c0_66 = arith.constant 0 : index
    %c0_67 = arith.constant 0 : index
    %154 = vector.load %arg9[%153, %c0_66, %c0_67] : memref<4x8x512xf32, #tpu.memory_space<vmem>>, vector<1x8x512xf32>
    %155 = vector.shape_cast %154 : vector<1x8x512xf32> to vector<8x512xf32>
    %cst_68 = arith.constant dense<0.000000e+00> : vector<8x512xf32>
    %156 = tpu.matmul %147, %13, %cst_68 {dimension_numbers = #tpu.dot_dimension_numbers<[1], [0], [0], [1], [0, 0, 1, 1], [], []>} : vector<8x128xf32>, vector<128x512xf32>, vector<8x512xf32> -> vector<8x512xf32>
    %157 = arith.addf %155, %156 : vector<8x512xf32>
    %158 = vector.extract_strided_slice %157 {offsets = [0, 0], sizes = [8, 128], strides = [1, 1]} : vector<8x512xf32> to vector<8x128xf32>
    %cst_69 = arith.constant 5.000000e-01 : f32
    %159 = vector.broadcast %cst_69 : f32 to vector<8x128xf32>
    %160 = arith.mulf %159, %158 : vector<8x128xf32>
    %161 = math.tanh %160 : vector<8x128xf32>
    %cst_70 = arith.constant 1.000000e+00 : f32
    %162 = vector.broadcast %cst_70 : f32 to vector<8x128xf32>
    %163 = arith.addf %161, %162 : vector<8x128xf32>
    %cst_71 = arith.constant 5.000000e-01 : f32
    %164 = vector.broadcast %cst_71 : f32 to vector<8x128xf32>
    %165 = arith.mulf %164, %163 : vector<8x128xf32>
    %166 = vector.extract_strided_slice %157 {offsets = [0, 128], sizes = [8, 128], strides = [1, 1]} : vector<8x512xf32> to vector<8x128xf32>
    %cst_72 = arith.constant 5.000000e-01 : f32
    %167 = vector.broadcast %cst_72 : f32 to vector<8x128xf32>
    %168 = arith.mulf %167, %166 : vector<8x128xf32>
    %169 = math.tanh %168 : vector<8x128xf32>
    %cst_73 = arith.constant 1.000000e+00 : f32
    %170 = vector.broadcast %cst_73 : f32 to vector<8x128xf32>
    %171 = arith.addf %169, %170 : vector<8x128xf32>
    %cst_74 = arith.constant 5.000000e-01 : f32
    %172 = vector.broadcast %cst_74 : f32 to vector<8x128xf32>
    %173 = arith.mulf %172, %171 : vector<8x128xf32>
    %174 = vector.extract_strided_slice %157 {offsets = [0, 256], sizes = [8, 128], strides = [1, 1]} : vector<8x512xf32> to vector<8x128xf32>
    %175 = math.tanh %174 : vector<8x128xf32>
    %176 = vector.extract_strided_slice %157 {offsets = [0, 384], sizes = [8, 128], strides = [1, 1]} : vector<8x512xf32> to vector<8x128xf32>
    %cst_75 = arith.constant 5.000000e-01 : f32
    %177 = vector.broadcast %cst_75 : f32 to vector<8x128xf32>
    %178 = arith.mulf %177, %176 : vector<8x128xf32>
    %179 = math.tanh %178 : vector<8x128xf32>
    %cst_76 = arith.constant 1.000000e+00 : f32
    %180 = vector.broadcast %cst_76 : f32 to vector<8x128xf32>
    %181 = arith.addf %179, %180 : vector<8x128xf32>
    %cst_77 = arith.constant 5.000000e-01 : f32
    %182 = vector.broadcast %cst_77 : f32 to vector<8x128xf32>
    %183 = arith.mulf %182, %181 : vector<8x128xf32>
    %184 = arith.mulf %173, %148 : vector<8x128xf32>
    %185 = arith.mulf %165, %175 : vector<8x128xf32>
    %186 = arith.addf %184, %185 : vector<8x128xf32>
    %187 = math.tanh %186 : vector<8x128xf32>
    %188 = arith.mulf %183, %187 : vector<8x128xf32>
    %c4_i32_78 = arith.constant 4 : i32
    %189 = arith.muli %arg0, %c4_i32_78 : i32
    %190 = arith.addi %189, %c3_i32 : i32
    %c10_i32_79 = arith.constant 10 : i32
    %191 = arith.cmpi slt, %190, %c10_i32_79 : i32
    %192 = arith.select %191, %188, %147 : vector<8x128xf32>
    %193 = arith.select %191, %186, %148 : vector<8x128xf32>
    %194 = arith.index_cast %c3_i32 : i32 to index
    %c0_80 = arith.constant 0 : index
    %c0_81 = arith.constant 0 : index
    %195 = vector.load %arg10[%194, %c0_80, %c0_81] : memref<4x8x128xf32, #tpu.memory_space<vmem>>, vector<1x8x128xf32>
    %196 = vector.shape_cast %195 : vector<1x8x128xf32> to vector<8x128xf32>
    %197 = vector.shape_cast %192 : vector<8x128xf32> to vector<1x8x128xf32>
    tpu.vector_store %arg10[%194, %c0_80, %c0_81], %197 {strides = array<i32>} : memref<4x8x128xf32, #tpu.memory_space<vmem>>, vector<1x8x128xf32>,
    %c4_i32_82 = arith.constant 4 : i32
    %c0_83 = arith.constant 0 : index
    %c0_84 = arith.constant 0 : index
    %c0_85 = arith.constant 0 : index
    %198 = vector.load %arg7[%c0_83, %c0_84, %c0_85] : memref<2x8x128xf32, #tpu.memory_space<vmem>>, vector<1x8x128xf32>
    %199 = vector.shape_cast %198 : vector<1x8x128xf32> to vector<8x128xf32>
    %200 = vector.shape_cast %192 : vector<8x128xf32> to vector<1x8x128xf32>
    tpu.vector_store %arg7[%c0_83, %c0_84, %c0_85], %200 {strides = array<i32>} : memref<2x8x128xf32, #tpu.memory_space<vmem>>, vector<1x8x128xf32>,
    %c0_86 = arith.constant 0 : index
    %c0_87 = arith.constant 0 : index
    %c0_88 = arith.constant 0 : index
    %201 = vector.load %arg8[%c0_86, %c0_87, %c0_88] : memref<2x8x128xf32, #tpu.memory_space<vmem>>, vector<1x8x128xf32>
    %202 = vector.shape_cast %201 : vector<1x8x128xf32> to vector<8x128xf32>
    %203 = vector.shape_cast %193 : vector<8x128xf32> to vector<1x8x128xf32>
    tpu.vector_store %arg8[%c0_86, %c0_87, %c0_88], %203 {strides = array<i32>} : memref<2x8x128xf32, #tpu.memory_space<vmem>>, vector<1x8x128xf32>,
    %c0_89 = arith.constant 0 : index
    %c0_90 = arith.constant 0 : index
    %c0_91 = arith.constant 0 : index
    %204 = vector.load %arg10[%c0_89, %c0_90, %c0_91] : memref<4x8x128xf32, #tpu.memory_space<vmem>>, vector<4x8x128xf32>
    %205 = vector.shape_cast %204 : vector<4x8x128xf32> to vector<32x128xf32>
    %c0_92 = arith.constant 0 : index
    %c0_93 = arith.constant 0 : index
    %c0_94 = arith.constant 0 : index
    %206 = vector.load %arg5[%c0_92, %c0_93, %c0_94] : memref<1x128x512xf32, #tpu.memory_space<vmem>>, vector<1x128x512xf32>
    %207 = vector.shape_cast %206 : vector<1x128x512xf32> to vector<128x512xf32>
    %c0_95 = arith.constant 0 : index
    %c0_96 = arith.constant 0 : index
    %c0_97 = arith.constant 0 : index
    %208 = vector.load %arg6[%c0_95, %c0_96, %c0_97] : memref<1x1x512xf32, #tpu.memory_space<vmem>>, vector<1x1x512xf32>
    %209 = vector.shape_cast %208 : vector<1x1x512xf32> to vector<1x512xf32>
    %cst_98 = arith.constant dense<0.000000e+00> : vector<32x512xf32>
    %210 = tpu.matmul %205, %207, %cst_98 {dimension_numbers = #tpu.dot_dimension_numbers<[1], [0], [0], [1], [0, 0, 1, 1], [], []>} : vector<32x128xf32>, vector<128x512xf32>, vector<32x512xf32> -> vector<32x512xf32>
    %211 = vector.broadcast %209 : vector<1x512xf32> to vector<32x512xf32>
    %212 = arith.addf %210, %211 : vector<32x512xf32>
    %213 = vector.shape_cast %212 : vector<32x512xf32> to vector<4x8x512xf32>
    %c0_99 = arith.constant 0 : index
    %c0_100 = arith.constant 0 : index
    %c0_101 = arith.constant 0 : index
    %214 = vector.load %arg9[%c0_99, %c0_100, %c0_101] : memref<4x8x512xf32, #tpu.memory_space<vmem>>, vector<4x8x512xf32>
    tpu.vector_store %arg9[%c0_99, %c0_100, %c0_101], %213 {strides = array<i32>} : memref<4x8x512xf32, #tpu.memory_space<vmem>>, vector<4x8x512xf32>,
    %c1 = arith.constant 1 : index
    %c0_102 = arith.constant 0 : index
    %c0_103 = arith.constant 0 : index
    %215 = vector.load %arg4[%c1, %c0_102, %c0_103] : memref<2x128x512xf32, #tpu.memory_space<vmem>>, vector<1x128x512xf32>
    %216 = vector.shape_cast %215 : vector<1x128x512xf32> to vector<128x512xf32>
    %c1_104 = arith.constant 1 : index
    %c0_105 = arith.constant 0 : index
    %c0_106 = arith.constant 0 : index
    %217 = vector.load %arg7[%c1_104, %c0_105, %c0_106] : memref<2x8x128xf32, #tpu.memory_space<vmem>>, vector<1x8x128xf32>
    %218 = vector.shape_cast %217 : vector<1x8x128xf32> to vector<8x128xf32>
    %c1_107 = arith.constant 1 : index
    %c0_108 = arith.constant 0 : index
    %c0_109 = arith.constant 0 : index
    %219 = vector.load %arg8[%c1_107, %c0_108, %c0_109] : memref<2x8x128xf32, #tpu.memory_space<vmem>>, vector<1x8x128xf32>
    %220 = vector.shape_cast %219 : vector<1x8x128xf32> to vector<8x128xf32>
    %c0_i32_110 = arith.constant 0 : i32
    %221 = arith.index_cast %c0_i32_110 : i32 to index
    %c0_111 = arith.constant 0 : index
    %c0_112 = arith.constant 0 : index
    %222 = vector.load %arg9[%221, %c0_111, %c0_112] : memref<4x8x512xf32, #tpu.memory_space<vmem>>, vector<1x8x512xf32>
    %223 = vector.shape_cast %222 : vector<1x8x512xf32> to vector<8x512xf32>
    %cst_113 = arith.constant dense<0.000000e+00> : vector<8x512xf32>
    %224 = tpu.matmul %218, %216, %cst_113 {dimension_numbers = #tpu.dot_dimension_numbers<[1], [0], [0], [1], [0, 0, 1, 1], [], []>} : vector<8x128xf32>, vector<128x512xf32>, vector<8x512xf32> -> vector<8x512xf32>
    %225 = arith.addf %223, %224 : vector<8x512xf32>
    %226 = vector.extract_strided_slice %225 {offsets = [0, 0], sizes = [8, 128], strides = [1, 1]} : vector<8x512xf32> to vector<8x128xf32>
    %cst_114 = arith.constant 5.000000e-01 : f32
    %227 = vector.broadcast %cst_114 : f32 to vector<8x128xf32>
    %228 = arith.mulf %227, %226 : vector<8x128xf32>
    %229 = math.tanh %228 : vector<8x128xf32>
    %cst_115 = arith.constant 1.000000e+00 : f32
    %230 = vector.broadcast %cst_115 : f32 to vector<8x128xf32>
    %231 = arith.addf %229, %230 : vector<8x128xf32>
    %cst_116 = arith.constant 5.000000e-01 : f32
    %232 = vector.broadcast %cst_116 : f32 to vector<8x128xf32>
    %233 = arith.mulf %232, %231 : vector<8x128xf32>
    %234 = vector.extract_strided_slice %225 {offsets = [0, 128], sizes = [8, 128], strides = [1, 1]} : vector<8x512xf32> to vector<8x128xf32>
    %cst_117 = arith.constant 5.000000e-01 : f32
    %235 = vector.broadcast %cst_117 : f32 to vector<8x128xf32>
    %236 = arith.mulf %235, %234 : vector<8x128xf32>
    %237 = math.tanh %236 : vector<8x128xf32>
    %cst_118 = arith.constant 1.000000e+00 : f32
    %238 = vector.broadcast %cst_118 : f32 to vector<8x128xf32>
    %239 = arith.addf %237, %238 : vector<8x128xf32>
    %cst_119 = arith.constant 5.000000e-01 : f32
    %240 = vector.broadcast %cst_119 : f32 to vector<8x128xf32>
    %241 = arith.mulf %240, %239 : vector<8x128xf32>
    %242 = vector.extract_strided_slice %225 {offsets = [0, 256], sizes = [8, 128], strides = [1, 1]} : vector<8x512xf32> to vector<8x128xf32>
    %243 = math.tanh %242 : vector<8x128xf32>
    %244 = vector.extract_strided_slice %225 {offsets = [0, 384], sizes = [8, 128], strides = [1, 1]} : vector<8x512xf32> to vector<8x128xf32>
    %cst_120 = arith.constant 5.000000e-01 : f32
    %245 = vector.broadcast %cst_120 : f32 to vector<8x128xf32>
    %246 = arith.mulf %245, %244 : vector<8x128xf32>
    %247 = math.tanh %246 : vector<8x128xf32>
    %cst_121 = arith.constant 1.000000e+00 : f32
    %248 = vector.broadcast %cst_121 : f32 to vector<8x128xf32>
    %249 = arith.addf %247, %248 : vector<8x128xf32>
    %cst_122 = arith.constant 5.000000e-01 : f32
    %250 = vector.broadcast %cst_122 : f32 to vector<8x128xf32>
    %251 = arith.mulf %250, %249 : vector<8x128xf32>
    %252 = arith.mulf %241, %220 : vector<8x128xf32>
    %253 = arith.mulf %233, %243 : vector<8x128xf32>
    %254 = arith.addf %252, %253 : vector<8x128xf32>
    %255 = math.tanh %254 : vector<8x128xf32>
    %256 = arith.mulf %251, %255 : vector<8x128xf32>
    %c4_i32_123 = arith.constant 4 : i32
    %257 = arith.muli %arg0, %c4_i32_123 : i32
    %258 = arith.addi %257, %c0_i32_110 : i32
    %c10_i32_124 = arith.constant 10 : i32
    %259 = arith.cmpi slt, %258, %c10_i32_124 : i32
    %260 = arith.select %259, %256, %218 : vector<8x128xf32>
    %261 = arith.select %259, %254, %220 : vector<8x128xf32>
    %c1_i32_125 = arith.constant 1 : i32
    %262 = arith.index_cast %c1_i32_125 : i32 to index
    %c0_126 = arith.constant 0 : index
    %c0_127 = arith.constant 0 : index
    %263 = vector.load %arg9[%262, %c0_126, %c0_127] : memref<4x8x512xf32, #tpu.memory_space<vmem>>, vector<1x8x512xf32>
    %264 = vector.shape_cast %263 : vector<1x8x512xf32> to vector<8x512xf32>
    %cst_128 = arith.constant dense<0.000000e+00> : vector<8x512xf32>
    %265 = tpu.matmul %260, %216, %cst_128 {dimension_numbers = #tpu.dot_dimension_numbers<[1], [0], [0], [1], [0, 0, 1, 1], [], []>} : vector<8x128xf32>, vector<128x512xf32>, vector<8x512xf32> -> vector<8x512xf32>
    %266 = arith.addf %264, %265 : vector<8x512xf32>
    %267 = vector.extract_strided_slice %266 {offsets = [0, 0], sizes = [8, 128], strides = [1, 1]} : vector<8x512xf32> to vector<8x128xf32>
    %cst_129 = arith.constant 5.000000e-01 : f32
    %268 = vector.broadcast %cst_129 : f32 to vector<8x128xf32>
    %269 = arith.mulf %268, %267 : vector<8x128xf32>
    %270 = math.tanh %269 : vector<8x128xf32>
    %cst_130 = arith.constant 1.000000e+00 : f32
    %271 = vector.broadcast %cst_130 : f32 to vector<8x128xf32>
    %272 = arith.addf %270, %271 : vector<8x128xf32>
    %cst_131 = arith.constant 5.000000e-01 : f32
    %273 = vector.broadcast %cst_131 : f32 to vector<8x128xf32>
    %274 = arith.mulf %273, %272 : vector<8x128xf32>
    %275 = vector.extract_strided_slice %266 {offsets = [0, 128], sizes = [8, 128], strides = [1, 1]} : vector<8x512xf32> to vector<8x128xf32>
    %cst_132 = arith.constant 5.000000e-01 : f32
    %276 = vector.broadcast %cst_132 : f32 to vector<8x128xf32>
    %277 = arith.mulf %276, %275 : vector<8x128xf32>
    %278 = math.tanh %277 : vector<8x128xf32>
    %cst_133 = arith.constant 1.000000e+00 : f32
    %279 = vector.broadcast %cst_133 : f32 to vector<8x128xf32>
    %280 = arith.addf %278, %279 : vector<8x128xf32>
    %cst_134 = arith.constant 5.000000e-01 : f32
    %281 = vector.broadcast %cst_134 : f32 to vector<8x128xf32>
    %282 = arith.mulf %281, %280 : vector<8x128xf32>
    %283 = vector.extract_strided_slice %266 {offsets = [0, 256], sizes = [8, 128], strides = [1, 1]} : vector<8x512xf32> to vector<8x128xf32>
    %284 = math.tanh %283 : vector<8x128xf32>
    %285 = vector.extract_strided_slice %266 {offsets = [0, 384], sizes = [8, 128], strides = [1, 1]} : vector<8x512xf32> to vector<8x128xf32>
    %cst_135 = arith.constant 5.000000e-01 : f32
    %286 = vector.broadcast %cst_135 : f32 to vector<8x128xf32>
    %287 = arith.mulf %286, %285 : vector<8x128xf32>
    %288 = math.tanh %287 : vector<8x128xf32>
    %cst_136 = arith.constant 1.000000e+00 : f32
    %289 = vector.broadcast %cst_136 : f32 to vector<8x128xf32>
    %290 = arith.addf %288, %289 : vector<8x128xf32>
    %cst_137 = arith.constant 5.000000e-01 : f32
    %291 = vector.broadcast %cst_137 : f32 to vector<8x128xf32>
    %292 = arith.mulf %291, %290 : vector<8x128xf32>
    %293 = arith.mulf %282, %261 : vector<8x128xf32>
    %294 = arith.mulf %274, %284 : vector<8x128xf32>
    %295 = arith.addf %293, %294 : vector<8x128xf32>
    %296 = math.tanh %295 : vector<8x128xf32>
    %297 = arith.mulf %292, %296 : vector<8x128xf32>
    %c4_i32_138 = arith.constant 4 : i32
    %298 = arith.muli %arg0, %c4_i32_138 : i32
    %299 = arith.addi %298, %c1_i32_125 : i32
    %c10_i32_139 = arith.constant 10 : i32
    %300 = arith.cmpi slt, %299, %c10_i32_139 : i32
    %301 = arith.select %300, %297, %260 : vector<8x128xf32>
    %302 = arith.select %300, %295, %261 : vector<8x128xf32>
    %c2_i32_140 = arith.constant 2 : i32
    %303 = arith.index_cast %c2_i32_140 : i32 to index
    %c0_141 = arith.constant 0 : index
    %c0_142 = arith.constant 0 : index
    %304 = vector.load %arg9[%303, %c0_141, %c0_142] : memref<4x8x512xf32, #tpu.memory_space<vmem>>, vector<1x8x512xf32>
    %305 = vector.shape_cast %304 : vector<1x8x512xf32> to vector<8x512xf32>
    %cst_143 = arith.constant dense<0.000000e+00> : vector<8x512xf32>
    %306 = tpu.matmul %301, %216, %cst_143 {dimension_numbers = #tpu.dot_dimension_numbers<[1], [0], [0], [1], [0, 0, 1, 1], [], []>} : vector<8x128xf32>, vector<128x512xf32>, vector<8x512xf32> -> vector<8x512xf32>
    %307 = arith.addf %305, %306 : vector<8x512xf32>
    %308 = vector.extract_strided_slice %307 {offsets = [0, 0], sizes = [8, 128], strides = [1, 1]} : vector<8x512xf32> to vector<8x128xf32>
    %cst_144 = arith.constant 5.000000e-01 : f32
    %309 = vector.broadcast %cst_144 : f32 to vector<8x128xf32>
    %310 = arith.mulf %309, %308 : vector<8x128xf32>
    %311 = math.tanh %310 : vector<8x128xf32>
    %cst_145 = arith.constant 1.000000e+00 : f32
    %312 = vector.broadcast %cst_145 : f32 to vector<8x128xf32>
    %313 = arith.addf %311, %312 : vector<8x128xf32>
    %cst_146 = arith.constant 5.000000e-01 : f32
    %314 = vector.broadcast %cst_146 : f32 to vector<8x128xf32>
    %315 = arith.mulf %314, %313 : vector<8x128xf32>
    %316 = vector.extract_strided_slice %307 {offsets = [0, 128], sizes = [8, 128], strides = [1, 1]} : vector<8x512xf32> to vector<8x128xf32>
    %cst_147 = arith.constant 5.000000e-01 : f32
    %317 = vector.broadcast %cst_147 : f32 to vector<8x128xf32>
    %318 = arith.mulf %317, %316 : vector<8x128xf32>
    %319 = math.tanh %318 : vector<8x128xf32>
    %cst_148 = arith.constant 1.000000e+00 : f32
    %320 = vector.broadcast %cst_148 : f32 to vector<8x128xf32>
    %321 = arith.addf %319, %320 : vector<8x128xf32>
    %cst_149 = arith.constant 5.000000e-01 : f32
    %322 = vector.broadcast %cst_149 : f32 to vector<8x128xf32>
    %323 = arith.mulf %322, %321 : vector<8x128xf32>
    %324 = vector.extract_strided_slice %307 {offsets = [0, 256], sizes = [8, 128], strides = [1, 1]} : vector<8x512xf32> to vector<8x128xf32>
    %325 = math.tanh %324 : vector<8x128xf32>
    %326 = vector.extract_strided_slice %307 {offsets = [0, 384], sizes = [8, 128], strides = [1, 1]} : vector<8x512xf32> to vector<8x128xf32>
    %cst_150 = arith.constant 5.000000e-01 : f32
    %327 = vector.broadcast %cst_150 : f32 to vector<8x128xf32>
    %328 = arith.mulf %327, %326 : vector<8x128xf32>
    %329 = math.tanh %328 : vector<8x128xf32>
    %cst_151 = arith.constant 1.000000e+00 : f32
    %330 = vector.broadcast %cst_151 : f32 to vector<8x128xf32>
    %331 = arith.addf %329, %330 : vector<8x128xf32>
    %cst_152 = arith.constant 5.000000e-01 : f32
    %332 = vector.broadcast %cst_152 : f32 to vector<8x128xf32>
    %333 = arith.mulf %332, %331 : vector<8x128xf32>
    %334 = arith.mulf %323, %302 : vector<8x128xf32>
    %335 = arith.mulf %315, %325 : vector<8x128xf32>
    %336 = arith.addf %334, %335 : vector<8x128xf32>
    %337 = math.tanh %336 : vector<8x128xf32>
    %338 = arith.mulf %333, %337 : vector<8x128xf32>
    %c4_i32_153 = arith.constant 4 : i32
    %339 = arith.muli %arg0, %c4_i32_153 : i32
    %340 = arith.addi %339, %c2_i32_140 : i32
    %c10_i32_154 = arith.constant 10 : i32
    %341 = arith.cmpi slt, %340, %c10_i32_154 : i32
    %342 = arith.select %341, %338, %301 : vector<8x128xf32>
    %343 = arith.select %341, %336, %302 : vector<8x128xf32>
    %c3_i32_155 = arith.constant 3 : i32
    %344 = arith.index_cast %c3_i32_155 : i32 to index
    %c0_156 = arith.constant 0 : index
    %c0_157 = arith.constant 0 : index
    %345 = vector.load %arg9[%344, %c0_156, %c0_157] : memref<4x8x512xf32, #tpu.memory_space<vmem>>, vector<1x8x512xf32>
    %346 = vector.shape_cast %345 : vector<1x8x512xf32> to vector<8x512xf32>
    %cst_158 = arith.constant dense<0.000000e+00> : vector<8x512xf32>
    %347 = tpu.matmul %342, %216, %cst_158 {dimension_numbers = #tpu.dot_dimension_numbers<[1], [0], [0], [1], [0, 0, 1, 1], [], []>} : vector<8x128xf32>, vector<128x512xf32>, vector<8x512xf32> -> vector<8x512xf32>
    %348 = arith.addf %346, %347 : vector<8x512xf32>
    %349 = vector.extract_strided_slice %348 {offsets = [0, 0], sizes = [8, 128], strides = [1, 1]} : vector<8x512xf32> to vector<8x128xf32>
    %cst_159 = arith.constant 5.000000e-01 : f32
    %350 = vector.broadcast %cst_159 : f32 to vector<8x128xf32>
    %351 = arith.mulf %350, %349 : vector<8x128xf32>
    %352 = math.tanh %351 : vector<8x128xf32>
    %cst_160 = arith.constant 1.000000e+00 : f32
    %353 = vector.broadcast %cst_160 : f32 to vector<8x128xf32>
    %354 = arith.addf %352, %353 : vector<8x128xf32>
    %cst_161 = arith.constant 5.000000e-01 : f32
    %355 = vector.broadcast %cst_161 : f32 to vector<8x128xf32>
    %356 = arith.mulf %355, %354 : vector<8x128xf32>
    %357 = vector.extract_strided_slice %348 {offsets = [0, 128], sizes = [8, 128], strides = [1, 1]} : vector<8x512xf32> to vector<8x128xf32>
    %cst_162 = arith.constant 5.000000e-01 : f32
    %358 = vector.broadcast %cst_162 : f32 to vector<8x128xf32>
    %359 = arith.mulf %358, %357 : vector<8x128xf32>
    %360 = math.tanh %359 : vector<8x128xf32>
    %cst_163 = arith.constant 1.000000e+00 : f32
    %361 = vector.broadcast %cst_163 : f32 to vector<8x128xf32>
    %362 = arith.addf %360, %361 : vector<8x128xf32>
    %cst_164 = arith.constant 5.000000e-01 : f32
    %363 = vector.broadcast %cst_164 : f32 to vector<8x128xf32>
    %364 = arith.mulf %363, %362 : vector<8x128xf32>
    %365 = vector.extract_strided_slice %348 {offsets = [0, 256], sizes = [8, 128], strides = [1, 1]} : vector<8x512xf32> to vector<8x128xf32>
    %366 = math.tanh %365 : vector<8x128xf32>
    %367 = vector.extract_strided_slice %348 {offsets = [0, 384], sizes = [8, 128], strides = [1, 1]} : vector<8x512xf32> to vector<8x128xf32>
    %cst_165 = arith.constant 5.000000e-01 : f32
    %368 = vector.broadcast %cst_165 : f32 to vector<8x128xf32>
    %369 = arith.mulf %368, %367 : vector<8x128xf32>
    %370 = math.tanh %369 : vector<8x128xf32>
    %cst_166 = arith.constant 1.000000e+00 : f32
    %371 = vector.broadcast %cst_166 : f32 to vector<8x128xf32>
    %372 = arith.addf %370, %371 : vector<8x128xf32>
    %cst_167 = arith.constant 5.000000e-01 : f32
    %373 = vector.broadcast %cst_167 : f32 to vector<8x128xf32>
    %374 = arith.mulf %373, %372 : vector<8x128xf32>
    %375 = arith.mulf %364, %343 : vector<8x128xf32>
    %376 = arith.mulf %356, %366 : vector<8x128xf32>
    %377 = arith.addf %375, %376 : vector<8x128xf32>
    %378 = math.tanh %377 : vector<8x128xf32>
    %379 = arith.mulf %374, %378 : vector<8x128xf32>
    %c4_i32_168 = arith.constant 4 : i32
    %380 = arith.muli %arg0, %c4_i32_168 : i32
    %381 = arith.addi %380, %c3_i32_155 : i32
    %c10_i32_169 = arith.constant 10 : i32
    %382 = arith.cmpi slt, %381, %c10_i32_169 : i32
    %383 = arith.select %382, %379, %342 : vector<8x128xf32>
    %384 = arith.select %382, %377, %343 : vector<8x128xf32>
    %c4_i32_170 = arith.constant 4 : i32
    %c1_171 = arith.constant 1 : index
    %c0_172 = arith.constant 0 : index
    %c0_173 = arith.constant 0 : index
    %385 = vector.load %arg7[%c1_171, %c0_172, %c0_173] : memref<2x8x128xf32, #tpu.memory_space<vmem>>, vector<1x8x128xf32>
    %386 = vector.shape_cast %385 : vector<1x8x128xf32> to vector<8x128xf32>
    %387 = vector.shape_cast %383 : vector<8x128xf32> to vector<1x8x128xf32>
    tpu.vector_store %arg7[%c1_171, %c0_172, %c0_173], %387 {strides = array<i32>} : memref<2x8x128xf32, #tpu.memory_space<vmem>>, vector<1x8x128xf32>,
    %c1_174 = arith.constant 1 : index
    %c0_175 = arith.constant 0 : index
    %c0_176 = arith.constant 0 : index
    %388 = vector.load %arg8[%c1_174, %c0_175, %c0_176] : memref<2x8x128xf32, #tpu.memory_space<vmem>>, vector<1x8x128xf32>
    %389 = vector.shape_cast %388 : vector<1x8x128xf32> to vector<8x128xf32>
    %390 = vector.shape_cast %384 : vector<8x128xf32> to vector<1x8x128xf32>
    tpu.vector_store %arg8[%c1_174, %c0_175, %c0_176], %390 {strides = array<i32>} : memref<2x8x128xf32, #tpu.memory_space<vmem>>, vector<1x8x128xf32>,
    return
  }
  func.func @transform_0(%arg0: i32) -> (i32, i32, i32) {
    %c0_i32 = arith.constant 0 : i32
    %c0_i32_0 = arith.constant 0 : i32
    %c0_i32_1 = arith.constant 0 : i32
    return %arg0, %c0_i32, %c0_i32_0 : i32, i32, i32
  }
  func.func @transform_1(%arg0: i32) -> (i32, i32) {
    %c0_i32 = arith.constant 0 : i32
    %c0_i32_0 = arith.constant 0 : i32
    %c0_i32_1 = arith.constant 0 : i32
    return %c0_i32, %c0_i32_0 : i32, i32
  }
  func.func @transform_2(%arg0: i32) -> (i32, i32) {
    %c0_i32 = arith.constant 0 : i32
    %c0_i32_0 = arith.constant 0 : i32
    %c0_i32_1 = arith.constant 0 : i32
    return %c0_i32, %c0_i32_0 : i32, i32
  }
  func.func @transform_3(%arg0: i32) -> (i32, i32, i32) {
    %c0_i32 = arith.constant 0 : i32
    %c0_i32_0 = arith.constant 0 : i32
    %c0_i32_1 = arith.constant 0 : i32
    %c0_i32_2 = arith.constant 0 : i32
    return %c0_i32, %c0_i32_0, %c0_i32_1 : i32, i32, i32
  }
  func.func @transform_4(%arg0: i32) -> (i32, i32, i32) {
    %c0_i32 = arith.constant 0 : i32
    %c0_i32_0 = arith.constant 0 : i32
    %c0_i32_1 = arith.constant 0 : i32
    %c0_i32_2 = arith.constant 0 : i32
    return %c0_i32, %c0_i32_0, %c0_i32_1 : i32, i32, i32
  }
  func.func @transform_5(%arg0: i32) -> (i32, i32, i32) {
    %c0_i32 = arith.constant 0 : i32
    %c0_i32_0 = arith.constant 0 : i32
    %c0_i32_1 = arith.constant 0 : i32
    %c0_i32_2 = arith.constant 0 : i32
    return %c0_i32, %c0_i32_0, %c0_i32_1 : i32, i32, i32
  }
  func.func @transform_6(%arg0: i32) -> (i32, i32, i32) {
    %c0_i32 = arith.constant 0 : i32
    %c0_i32_0 = arith.constant 0 : i32
    %c0_i32_1 = arith.constant 0 : i32
    %c0_i32_2 = arith.constant 0 : i32
    return %c0_i32, %c0_i32_0, %c0_i32_1 : i32, i32, i32
  }
  func.func @transform_7(%arg0: i32) -> (i32, i32, i32) {
    %c0_i32 = arith.constant 0 : i32
    %c0_i32_0 = arith.constant 0 : i32
    %c0_i32_1 = arith.constant 0 : i32
    %c0_i32_2 = arith.constant 0 : i32
    return %c0_i32, %c0_i32_0, %c0_i32_1 : i32, i32, i32
  }
}

</mosaic_0001>

<llo_original>
// kernel: tpu_custom_call.1
$region0: #{tpu_custom_call.1}
  #allocation0 [shape = 'u32[]', space=smem, size = 0x4, offset = 0x4, fixed_abs, tag = 'smem constant byte address 0x4 - core index']
  #allocation1 [shape = 'u32[72,128]{1,0:T(1,128)}', space=vmem, size = 0x9000, scoped, tag = 'internal scratch']
  #allocation2 [shape = 'f32[4,8,512]{2,1,0:T(8,128)}', space=vmem, size = 0x10000, scoped, tag = 'scratch operand']
  #allocation3 [shape = 'f32[4,8,128]{2,1,0:T(8,128)}', space=vmem, size = 0x4000, scoped, tag = 'scratch operand']
  %s0 = inlined_call_operand.hbm [shape: f32[12,8,128], index: 0, kind: input, shape index: {}]
  %s1 = inlined_call_operand.hbm [shape: f32[128,512], index: 1, kind: input, shape index: {}]
  %s2 = inlined_call_operand.hbm [shape: f32[1,512], index: 2, kind: input, shape index: {}]
  %s3 = inlined_call_operand.hbm [shape: f32[2,128,512], index: 3, kind: input, shape index: {}]
  %s4 = inlined_call_operand.hbm [shape: f32[1,128,512], index: 4, kind: input, shape index: {}]
  %s5 = inlined_call_operand.vmem [shape: f32[1,1,512], index: 5, kind: input, shape index: {}]
  %s6 = inlined_call_operand.hbm [shape: f32[2,8,128], index: 6, kind: output, shape index: {0}]
  %s7 = inlined_call_operand.hbm [shape: f32[2,8,128], index: 7, kind: output, shape index: {1}]
  %8 = xla_tuple %s6, %s7
  %s9 = sld [smem:[#allocation0]]
  $region89: #{tpu_custom_call.1} parent=0
    _
  %s11 = ssub.s32 1, %s9
  %s12 = scalar_select 0, %s11, %s9
  $region1: #{tpu_custom_call.1} parent=0
    #allocation4 [shape = 'u8[32768]{0}', space=vmem, size = 0x8000, scoped, tag = 'input window, operand 0']
    #allocation5 [shape = 's32[2]{0}', space=sflag, size = 0x8, scoped, tag = 'scoped memory for tpu_custom_call.1']
    #allocation6 [shape = 's32[2]{0}', space=sflag, size = 0x8, scoped, tag = 'scoped memory for tpu_custom_call.1']
    #allocation7 [shape = 'u8[262144]{0}', space=vmem, size = 0x40000, scoped, tag = 'input window, operand 1, single buffered']
    #allocation8 [shape = 's32[1]{0}', space=sflag, size = 0x4, scoped, tag = 'scoped memory for tpu_custom_call.1']
    #allocation9 [shape = 'u8[2048]{0}', space=vmem, size = 0x800, scoped, tag = 'input window, operand 2, single buffered']
    #allocation10 [shape = 'u8[524288]{0}', space=vmem, size = 0x80000, scoped, tag = 'input window, operand 3, single buffered']
    #allocation11 [shape = 's32[1]{0}', space=sflag, size = 0x4, scoped, tag = 'scoped memory for tpu_custom_call.1']
    #allocation12 [shape = 'u8[262144]{0}', space=vmem, size = 0x40000, scoped, tag = 'input window, operand 4, single buffered']
    #allocation13 [shape = 'u8[8192]{0}', space=vmem, size = 0x2000, scoped, tag = 'output window, operand 0, single buffered']
    #allocation14 [shape = 'u8[8192]{0}', space=vmem, size = 0x2000, scoped, tag = 'output window, operand 1, single buffered']
    #allocation15 [shape = 's32[1]{0}', space=sflag, size = 0x4, scoped, tag = 'scoped memory for tpu_custom_call.1']
    %13 = vsyncpa [#allocation5], 0
    %s14 = scalar_lea.sflag [#allocation5], 1
    %15 = vsyncpa %s14, 0
    %16 = vsyncpa [#allocation8], 0
    %17 = vsyncpa [#allocation11], 0
    %18 = vsyncpa [#allocation6], 0
    %19 = vsyncpa [#allocation15], 0
    loop: start=0, step=1, limit=5
    $region2: #{tpu_custom_call.1} parent=1 // loop_pre_header
      _
    $region3: #{tpu_custom_call.1} parent=1 // loop_header
      %s21 = sphi 0, %s25
      %p22 = scmp.ge.s32.totalorder %s21, 5
      %s31 = sphi 0, %s33
      %s34 = sphi 0, %s31
      %s35 = sphi 0, %s34
      %s51 = sphi 0, %s35
      %s55 = sphi 0, %s55
      %s57 = sphi 0, %s55
      %s58 = sphi 0, %s57
      %s72 = sphi 0, %s58
      %s76 = sphi 0, %s76
      %s78 = sphi 0, %s76
      %s79 = sphi 0, %s78
      %s93 = sphi 0, %s79
      %s97 = sphi 0, %s97
      %s99 = sphi 0, %s97
      %s100 = sphi 0, %s99
      %s114 = sphi 0, %s100
      %s118 = sphi 0, %s118
      %s120 = sphi 0, %s118
      %s121 = sphi 0, %s120
      %s135 = sphi 0, %s121
      %s139 = sphi 0, %s139
      %s141 = sphi 0, %s139
      %s142 = sphi 0, %s141
      %s156 = sphi 0, %s142
      %s160 = sphi 0, %s160
      %s162 = sphi 0, %s160
      %s163 = sphi 0, %s162
      %s177 = sphi 0, %s163
      %s181 = sphi 0, %s181
      %s183 = sphi 0, %s181
      %s184 = sphi 0, %s183
      %s198 = sphi 0, %s184
    $region4: #{tpu_custom_call.1} parent=1 // loop_header_branch
      %24 = sbr.rel (%p22) target = $region8
    $region5: #{tpu_custom_call.1} parent=1 // loop_body
      %s26 = ssub.s32 %s21, 1
      %s27 = ssub.s32 %s21, 2
      %s28 = sadd.s32 %s21, 1
      %s29 = ssub.s32 %s21, %s28
      %p30 = scmp.eq.s32.totalorder %s29, 0
      %s32 = sadd.s32 %s31, 1
      %s33 = scalar_select %p30, %s31, %s32
      %p36 = pneg %p30
      %p37 = scmp.eq.s32.totalorder %s21, 2
      %p38 = por %p36, %p37
      %p39 = scmp.ne.s32.totalorder %s31, %s34
      %p40 = scmp.eq.s32.totalorder %s21, 0
      %p41 = por %p39, %p40
      %p42 = scmp.ne.s32.totalorder %s31, %s34
      %p43 = scmp.eq.s32.totalorder %s26, 2
      %p44 = por %p42, %p43
      %p45 = scmp.ne.s32.totalorder %s34, %s35
      %p46 = scmp.eq.s32.totalorder %s26, 0
      %p47 = por %p45, %p46
      %p48 = scmp.ne.s32.totalorder %s34, %s35
      %p49 = scmp.eq.s32.totalorder %s27, 2
      %p50 = por %p48, %p49
      %p52 = scmp.ne.s32.totalorder %s35, %s51
      %p53 = scmp.eq.s32.totalorder %s27, 0
      %p54 = por %p52, %p53
      %s56 = sadd.s32 %s55, 1
      %p59 = scmp.eq.s32.totalorder %s21, 2
      %p60 = scmp.ne.s32.totalorder %s55, %s57
      %p61 = scmp.eq.s32.totalorder %s21, 0
      %p62 = por %p60, %p61
      %p63 = scmp.ne.s32.totalorder %s55, %s57
      %p64 = scmp.eq.s32.totalorder %s26, 2
      %p65 = por %p63, %p64
      %p66 = scmp.ne.s32.totalorder %s57, %s58
      %p67 = scmp.eq.s32.totalorder %s26, 0
      %p68 = por %p66, %p67
      %p69 = scmp.ne.s32.totalorder %s57, %s58
      %p70 = scmp.eq.s32.totalorder %s27, 2
      %p71 = por %p69, %p70
      %p73 = scmp.ne.s32.totalorder %s58, %s72
      %p74 = scmp.eq.s32.totalorder %s27, 0
      %p75 = por %p73, %p74
      %s77 = sadd.s32 %s76, 1
      %p80 = scmp.eq.s32.totalorder %s21, 2
      %p81 = scmp.ne.s32.totalorder %s76, %s78
      %p82 = scmp.eq.s32.totalorder %s21, 0
      %p83 = por %p81, %p82
      %p84 = scmp.ne.s32.totalorder %s76, %s78
      %p85 = scmp.eq.s32.totalorder %s26, 2
      %p86 = por %p84, %p85
      %p87 = scmp.ne.s32.totalorder %s78, %s79
      %p88 = scmp.eq.s32.totalorder %s26, 0
      %p89 = por %p87, %p88
      %p90 = scmp.ne.s32.totalorder %s78, %s79
      %p91 = scmp.eq.s32.totalorder %s27, 2
      %p92 = por %p90, %p91
      %p94 = scmp.ne.s32.totalorder %s79, %s93
      %p95 = scmp.eq.s32.totalorder %s27, 0
      %p96 = por %p94, %p95
      %s98 = sadd.s32 %s97, 1
      %p101 = scmp.eq.s32.totalorder %s21, 2
      %p102 = scmp.ne.s32.totalorder %s97, %s99
      %p103 = scmp.eq.s32.totalorder %s21, 0
      %p104 = por %p102, %p103
      %p105 = scmp.ne.s32.totalorder %s97, %s99
      %p106 = scmp.eq.s32.totalorder %s26, 2
      %p107 = por %p105, %p106
      %p108 = scmp.ne.s32.totalorder %s99, %s100
      %p109 = scmp.eq.s32.totalorder %s26, 0
      %p110 = por %p108, %p109
      %p111 = scmp.ne.s32.totalorder %s99, %s100
      %p112 = scmp.eq.s32.totalorder %s27, 2
      %p113 = por %p111, %p112
      %p115 = scmp.ne.s32.totalorder %s100, %s114
      %p116 = scmp.eq.s32.totalorder %s27, 0
      %p117 = por %p115, %p116
      %s119 = sadd.s32 %s118, 1
      %p122 = scmp.eq.s32.totalorder %s21, 2
      %p123 = scmp.ne.s32.totalorder %s118, %s120
      %p124 = scmp.eq.s32.totalorder %s21, 0
      %p125 = por %p123, %p124
      %p126 = scmp.ne.s32.totalorder %s118, %s120
      %p127 = scmp.eq.s32.totalorder %s26, 2
      %p128 = por %p126, %p127
      %p129 = scmp.ne.s32.totalorder %s120, %s121
      %p130 = scmp.eq.s32.totalorder %s26, 0
      %p131 = por %p129, %p130
      %p132 = scmp.ne.s32.totalorder %s120, %s121
      %p133 = scmp.eq.s32.totalorder %s27, 2
      %p134 = por %p132, %p133
      %p136 = scmp.ne.s32.totalorder %s121, %s135
      %p137 = scmp.eq.s32.totalorder %s27, 0
      %p138 = por %p136, %p137
      %s140 = sadd.s32 %s139, 1
      %p143 = scmp.eq.s32.totalorder %s21, 2
      %p144 = scmp.ne.s32.totalorder %s139, %s141
      %p145 = scmp.eq.s32.totalorder %s21, 0
      %p146 = por %p144, %p145
      %p147 = scmp.ne.s32.totalorder %s139, %s141
      %p148 = scmp.eq.s32.totalorder %s26, 2
      %p149 = por %p147, %p148
      %p150 = scmp.ne.s32.totalorder %s141, %s142
      %p151 = scmp.eq.s32.totalorder %s26, 0
      %p152 = por %p150, %p151
      %p153 = scmp.ne.s32.totalorder %s141, %s142
      %p154 = scmp.eq.s32.totalorder %s27, 2
      %p155 = por %p153, %p154
      %p157 = scmp.ne.s32.totalorder %s142, %s156
      %p158 = scmp.eq.s32.totalorder %s27, 0
      %p159 = por %p157, %p158
      %s161 = sadd.s32 %s160, 1
      %p164 = scmp.eq.s32.totalorder %s21, 2
      %p165 = scmp.ne.s32.totalorder %s160, %s162
      %p166 = scmp.eq.s32.totalorder %s21, 0
      %p167 = por %p165, %p166
      %p168 = scmp.ne.s32.totalorder %s160, %s162
      %p169 = scmp.eq.s32.totalorder %s26, 2
      %p170 = por %p168, %p169
      %p171 = scmp.ne.s32.totalorder %s162, %s163
      %p172 = scmp.eq.s32.totalorder %s26, 0
      %p173 = por %p171, %p172
      %p174 = scmp.ne.s32.totalorder %s162, %s163
      %p175 = scmp.eq.s32.totalorder %s27, 2
      %p176 = por %p174, %p175
      %p178 = scmp.ne.s32.totalorder %s163, %s177
      %p179 = scmp.eq.s32.totalorder %s27, 0
      %p180 = por %p178, %p179
      %s182 = sadd.s32 %s181, 1
      %p185 = scmp.eq.s32.totalorder %s21, 2
      %p186 = scmp.ne.s32.totalorder %s181, %s183
      %p187 = scmp.eq.s32.totalorder %s21, 0
      %p188 = por %p186, %p187
      %p189 = scmp.ne.s32.totalorder %s181, %s183
      %p190 = scmp.eq.s32.totalorder %s26, 2
      %p191 = por %p189, %p190
      %p192 = scmp.ne.s32.totalorder %s183, %s184
      %p193 = scmp.eq.s32.totalorder %s26, 0
      %p194 = por %p192, %p193
      %p195 = scmp.ne.s32.totalorder %s183, %s184
      %p196 = scmp.eq.s32.totalorder %s27, 2
      %p197 = por %p195, %p196
      %p199 = scmp.ne.s32.totalorder %s184, %s198
      %p200 = scmp.eq.s32.totalorder %s27, 0
      %p201 = por %p199, %p200
      %p202 = scmp.le.s32.totalorder 1, %s21
      %p203 = scmp.lt.s32.totalorder %s21, 4
      %p204 = pnand %p202, %p203
      %p205 = pneg %p204
      // Predicated region
      $region9: #{tpu_custom_call.1} parent=5 // pred_check
        _
      $region10: #{tpu_custom_call.1} parent=5 // pred_check_branch
        %207 = sbr.rel (%p204) target = $region12
      $region11: #{tpu_custom_call.1} parent=5 // pred_region
        %s208 = ssub.s32 %s21, 1
        // Predicated region
        $region13: #{tpu_custom_call.1} parent=11 // pred_check
          %p209 = pneg %p68
        $region14: #{tpu_custom_call.1} parent=11 // pred_check_branch
          %211 = sbr.rel (%p209) target = $region16
        $region15: #{tpu_custom_call.1} parent=11 // pred_region
          %213 = vsyncadd [#allocation8], 0
          %s214 = sshll.u32 %s1, 4
          %s215 = int_to_ptr.hbm [resolvable:$true] %s214
          %s216 = sshll.u32 [#allocation7], 4
          %s217 = int_to_ptr.vmem [resolvable:$true] %s216
          %222 = dma.hbm_to_vmem [thread:$0]  %s215, 8192, %s217, [#allocation8], 512, 512, 32
        $region16: #{tpu_custom_call.1} parent=11 // pred_fallthru
          _
        // Predicated region
        $region17: #{tpu_custom_call.1} parent=11 // pred_check
          %p223 = pneg %p89
        $region18: #{tpu_custom_call.1} parent=11 // pred_check_branch
          %225 = sbr.rel (%p223) target = $region20
        $region19: #{tpu_custom_call.1} parent=11 // pred_region
          %227 = vsyncadd [#allocation8], 0
          %s229 = sshll.u32 %s2, 4
          %s230 = int_to_ptr.hbm [resolvable:$true] %s229
          %s231 = sshll.u32 [#allocation9], 4
          %s232 = int_to_ptr.vmem [resolvable:$true] %s231
          %234 = dma.hbm_to_vmem [thread:$0]  %s230, 64, %s232, [#allocation8]
        $region20: #{tpu_custom_call.1} parent=11 // pred_fallthru
          _
        // Predicated region
        $region21: #{tpu_custom_call.1} parent=11 // pred_check
          %p235 = pneg %p110
        $region22: #{tpu_custom_call.1} parent=11 // pred_check_branch
          %237 = sbr.rel (%p235) target = $region24
        $region23: #{tpu_custom_call.1} parent=11 // pred_region
          %239 = vsyncadd [#allocation11], 0
          %s240 = sshll.u32 %s3, 4
          %s241 = int_to_ptr.hbm [resolvable:$true] %s240
          %s242 = sshll.u32 [#allocation10], 4
          %s243 = int_to_ptr.vmem [resolvable:$true] %s242
          %248 = dma.hbm_to_vmem [thread:$0]  %s241, 16384, %s243, [#allocation11], 512, 512, 32
        $region24: #{tpu_custom_call.1} parent=11 // pred_fallthru
          _
        // Predicated region
        $region25: #{tpu_custom_call.1} parent=11 // pred_check
          %p249 = pneg %p131
        $region26: #{tpu_custom_call.1} parent=11 // pred_check_branch
          %251 = sbr.rel (%p249) target = $region28
        $region27: #{tpu_custom_call.1} parent=11 // pred_region
          %253 = vsyncadd [#allocation11], 0
          %s254 = sshll.u32 %s4, 4
          %s255 = int_to_ptr.hbm [resolvable:$true] %s254
          %s256 = sshll.u32 [#allocation12], 4
          %s257 = int_to_ptr.vmem [resolvable:$true] %s256
          %262 = dma.hbm_to_vmem [thread:$0]  %s255, 8192, %s257, [#allocation11], 512, 512, 32
        $region28: #{tpu_custom_call.1} parent=11 // pred_fallthru
          _
        // Predicated region
        $region29: #{tpu_custom_call.1} parent=11 // pred_check
          %p263 = pneg %p152
        $region30: #{tpu_custom_call.1} parent=11 // pred_check_branch
          %265 = sbr.rel (%p263) target = $region32
        $region31: #{tpu_custom_call.1} parent=11 // pred_region
          _
        $region32: #{tpu_custom_call.1} parent=11 // pred_fallthru
          _
      $region12: #{tpu_custom_call.1} parent=5 // pred_fallthru
        _
      %p266 = scmp.lt.s32.totalorder %s21, 3
      // Predicated region
      $region33: #{tpu_custom_call.1} parent=5 // pred_check
        %p267 = pneg %p266
      $region34: #{tpu_custom_call.1} parent=5 // pred_check_branch
        %269 = sbr.rel (%p267) target = $region36
      $region35: #{tpu_custom_call.1} parent=5 // pred_region
        // Predicated region
        $region37: #{tpu_custom_call.1} parent=35 // pred_check
          %p270 = pneg %p41
        $region38: #{tpu_custom_call.1} parent=35 // pred_check_branch
          %272 = sbr.rel (%p270) target = $region40
        $region39: #{tpu_custom_call.1} parent=35 // pred_region
          %s273 = sand.u32 %s31, 1
          %s274 = scalar_lea.sflag [#allocation5], %s273
          %s275 = sand.u32 %s31, 1
          %s276 = smul.addr %s275, 32
          %s277 = scalar_lea.vmem [#allocation4], %s276
          %s278 = smul.u32 4, %s21
          %280 = vsyncadd %s274, 0
          %s281 = smul.addr %s278, 8
          %s282 = scalar_lea.hbm %s0, %s281
          %s283 = sshll.u32 %s282, 4
          %s284 = int_to_ptr.hbm [resolvable:$true] %s283
          %s285 = sshll.u32 %s277, 4
          %s286 = int_to_ptr.vmem [resolvable:$true] %s285
          %291 = dma.hbm_to_vmem [thread:$0]  %s284, 512, %s286, %s274, 128, 128, 8
        $region40: #{tpu_custom_call.1} parent=35 // pred_fallthru
          _
      $region36: #{tpu_custom_call.1} parent=5 // pred_fallthru
        _
      %p292 = scmp.le.s32.totalorder 1, %s21
      %p293 = scmp.lt.s32.totalorder %s21, 4
      %p294 = pnand %p292, %p293
      %p295 = pneg %p294
      // Predicated region
      $region41: #{tpu_custom_call.1} parent=5 // pred_check
        _
      $region42: #{tpu_custom_call.1} parent=5 // pred_check_branch
        %297 = sbr.rel (%p294) target = $region44
      $region43: #{tpu_custom_call.1} parent=5 // pred_region
        %s298 = ssub.s32 %s21, 1
        %s299 = sand.u32 %s34, 1
        %s300 = scalar_lea.sflag [#allocation5], %s299
        %s301 = sand.u32 %s34, 1
        %s302 = smul.addr %s301, 32
        %s303 = scalar_lea.vmem [#allocation4], %s302
        // Predicated region
        $region45: #{tpu_custom_call.1} parent=43 // pred_check
          %p304 = pneg %p47
        $region46: #{tpu_custom_call.1} parent=43 // pred_check_branch
          %306 = sbr.rel (%p304) target = $region48
        $region47: #{tpu_custom_call.1} parent=43 // pred_region
          %308 = dma.done %s300, 512
        $region48: #{tpu_custom_call.1} parent=43 // pred_fallthru
          _
        // Predicated region
        $region49: #{tpu_custom_call.1} parent=43 // pred_check
          %p309 = pneg %p68
        $region50: #{tpu_custom_call.1} parent=43 // pred_check_branch
          %311 = sbr.rel (%p309) target = $region52
        $region51: #{tpu_custom_call.1} parent=43 // pred_region
          %313 = dma.done [#allocation8], 8192
        $region52: #{tpu_custom_call.1} parent=43 // pred_fallthru
          _
        // Predicated region
        $region53: #{tpu_custom_call.1} parent=43 // pred_check
          %p314 = pneg %p89
        $region54: #{tpu_custom_call.1} parent=43 // pred_check_branch
          %316 = sbr.rel (%p314) target = $region56
        $region55: #{tpu_custom_call.1} parent=43 // pred_region
          %318 = dma.done [#allocation8], 64
        $region56: #{tpu_custom_call.1} parent=43 // pred_fallthru
          _
        // Predicated region
        $region57: #{tpu_custom_call.1} parent=43 // pred_check
          %p319 = pneg %p110
        $region58: #{tpu_custom_call.1} parent=43 // pred_check_branch
          %321 = sbr.rel (%p319) target = $region60
        $region59: #{tpu_custom_call.1} parent=43 // pred_region
          %323 = dma.done [#allocation11], 16384
        $region60: #{tpu_custom_call.1} parent=43 // pred_fallthru
          _
        // Predicated region
        $region61: #{tpu_custom_call.1} parent=43 // pred_check
          %p324 = pneg %p131
        $region62: #{tpu_custom_call.1} parent=43 // pred_check_branch
          %326 = sbr.rel (%p324) target = $region64
        $region63: #{tpu_custom_call.1} parent=43 // pred_region
          %328 = dma.done [#allocation11], 8192
        $region64: #{tpu_custom_call.1} parent=43 // pred_fallthru
          _
        %s329 = sand.u32 %s34, 1
        %s330 = scalar_lea.sflag [#allocation5], %s329
        %s331 = sand.u32 %s34, 1
        %s332 = smul.addr %s331, 32
        %s333 = scalar_lea.vmem [#allocation4], %s332
        %p334 = pneg %p47
        %p335 = pneg %p44
        %p336 = pneg %p68
        %p337 = pneg %p65
        %p338 = pneg %p89
        %p339 = pneg %p86
        %p340 = pneg %p110
        %p341 = pneg %p107
        %p342 = pneg %p131
        %p343 = pneg %p128
        %p344 = pneg %p152
        %p345 = pneg %p149
        %p346 = pneg %p173
        %p347 = pneg %p170
        %p348 = pneg %p194
        %p349 = pneg %p191
        %s350 = smul.u32 4, %s26
        %p351 = scmp.eq.s32.totalorder %s26, 0
        // Predicated region
        $region65: #{tpu_custom_call.1} parent=43 // pred_check
          %p352 = pneg %p351
        $region66: #{tpu_custom_call.1} parent=43 // pred_check_branch
          %354 = sbr.rel (%p352) target = $region68
        $region67: #{tpu_custom_call.1} parent=43 // pred_region
          %355 = vst [vmem:[#allocation13] sm:$0xff] 0.0
          %356 = vst [vmem:[#allocation13 + $0x8] sm:$0xff] 0.0
          %357 = vst [vmem:[#allocation14] sm:$0xff] 0.0
          %358 = vst [vmem:[#allocation14 + $0x8] sm:$0xff] 0.0
        $region68: #{tpu_custom_call.1} parent=43 // pred_fallthru
          _
        %v359 = vld [vmem:[%s303] sm:$0xff]
        %v360 = vld [vmem:[%s303 + $0x8] sm:$0xff]
        %v361 = vld [vmem:[%s303 + $0x10] sm:$0xff]
        %v362 = vld [vmem:[%s303 + $0x18] sm:$0xff]
        %v363 = vld [vmem:[#allocation7] sm:$0xff]
        %v364 = vld [vmem:[#allocation7 + $0x8] sm:$0xff]
        %v365 = vld [vmem:[#allocation7 + $0x10] sm:$0xff]
        %v366 = vld [vmem:[#allocation7 + $0x18] sm:$0xff]
        %v367 = vld [vmem:[#allocation7 + $0x20] sm:$0xff]
        %v368 = vld [vmem:[#allocation7 + $0x28] sm:$0xff]
        %v369 = vld [vmem:[#allocation7 + $0x30] sm:$0xff]
        %v370 = vld [vmem:[#allocation7 + $0x38] sm:$0xff]
        %v371 = vld [vmem:[#allocation7 + $0x40] sm:$0xff]
        %v372 = vld [vmem:[#allocation7 + $0x48] sm:$0xff]
        %v373 = vld [vmem:[#allocation7 + $0x50] sm:$0xff]
        %v374 = vld [vmem:[#allocation7 + $0x58] sm:$0xff]
        %v375 = vld [vmem:[#allocation7 + $0x60] sm:$0xff]
        %v376 = vld [vmem:[#allocation7 + $0x68] sm:$0xff]
        %v377 = vld [vmem:[#allocation7 + $0x70] sm:$0xff]
        %v378 = vld [vmem:[#allocation7 + $0x78] sm:$0xff]
        %v379 = vld [vmem:[#allocation7 + $0x80] sm:$0xff]
        %v380 = vld [vmem:[#allocation7 + $0x88] sm:$0xff]
        %v381 = vld [vmem:[#allocation7 + $0x90] sm:$0xff]
        %v382 = vld [vmem:[#allocation7 + $0x98] sm:$0xff]
        %v383 = vld [vmem:[#allocation7 + $0xa0] sm:$0xff]
        %v384 = vld [vmem:[#allocation7 + $0xa8] sm:$0xff]
        %v385 = vld [vmem:[#allocation7 + $0xb0] sm:$0xff]
        %v386 = vld [vmem:[#allocation7 + $0xb8] sm:$0xff]
        %v387 = vld [vmem:[#allocation7 + $0xc0] sm:$0xff]
        %v388 = vld [vmem:[#allocation7 + $0xc8] sm:$0xff]
        %v389 = vld [vmem:[#allocation7 + $0xd0] sm:$0xff]
        %v390 = vld [vmem:[#allocation7 + $0xd8] sm:$0xff]
        %v391 = vld [vmem:[#allocation7 + $0xe0] sm:$0xff]
        %v392 = vld [vmem:[#allocation7 + $0xe8] sm:$0xff]
        %v393 = vld [vmem:[#allocation7 + $0xf0] sm:$0xff]
        %v394 = vld [vmem:[#allocation7 + $0xf8] sm:$0xff]
        %v395 = vld [vmem:[#allocation7 + $0x100] sm:$0xff]
        %v396 = vld [vmem:[#allocation7 + $0x108] sm:$0xff]
        %v397 = vld [vmem:[#allocation7 + $0x110] sm:$0xff]
        %v398 = vld [vmem:[#allocation7 + $0x118] sm:$0xff]
        %v399 = vld [vmem:[#allocation7 + $0x120] sm:$0xff]
        %v400 = vld [vmem:[#allocation7 + $0x128] sm:$0xff]
        %v401 = vld [vmem:[#allocation7 + $0x130] sm:$0xff]
        %v402 = vld [vmem:[#allocation7 + $0x138] sm:$0xff]
        %v403 = vld [vmem:[#allocation7 + $0x140] sm:$0xff]
        %v404 = vld [vmem:[#allocation7 + $0x148] sm:$0xff]
        %v405 = vld [vmem:[#allocation7 + $0x150] sm:$0xff]
        %v406 = vld [vmem:[#allocation7 + $0x158] sm:$0xff]
        %v407 = vld [vmem:[#allocation7 + $0x160] sm:$0xff]
        %v408 = vld [vmem:[#allocation7 + $0x168] sm:$0xff]
        %v409 = vld [vmem:[#allocation7 + $0x170] sm:$0xff]
        %v410 = vld [vmem:[#allocation7 + $0x178] sm:$0xff]
        %v411 = vld [vmem:[#allocation7 + $0x180] sm:$0xff]
        %v412 = vld [vmem:[#allocation7 + $0x188] sm:$0xff]
        %v413 = vld [vmem:[#allocation7 + $0x190] sm:$0xff]
        %v414 = vld [vmem:[#allocation7 + $0x198] sm:$0xff]
        %v415 = vld [vmem:[#allocation7 + $0x1a0] sm:$0xff]
        %v416 = vld [vmem:[#allocation7 + $0x1a8] sm:$0xff]
        %v417 = vld [vmem:[#allocation7 + $0x1b0] sm:$0xff]
        %v418 = vld [vmem:[#allocation7 + $0x1b8] sm:$0xff]
        %v419 = vld [vmem:[#allocation7 + $0x1c0] sm:$0xff]
        %v420 = vld [vmem:[#allocation7 + $0x1c8] sm:$0xff]
        %v421 = vld [vmem:[#allocation7 + $0x1d0] sm:$0xff]
        %v422 = vld [vmem:[#allocation7 + $0x1d8] sm:$0xff]
        %v423 = vld [vmem:[#allocation7 + $0x1e0] sm:$0xff]
        %v424 = vld [vmem:[#allocation7 + $0x1e8] sm:$0xff]
        %v425 = vld [vmem:[#allocation7 + $0x1f0] sm:$0xff]
        %v426 = vld [vmem:[#allocation7 + $0x1f8] sm:$0xff]
        %v427 = vld [vmem:[#allocation9] sm:$0xf]
        %v429 = vperm.slane %v427, 0
        %v430 = vperm.slane %v427, 1
        %v431 = vperm.slane %v427, 2
        %v432 = vperm.slane %v427, 3
        %437 = vmatpush.msra.mxu0 %v423
        %438 = vmatpush.msra.mxu0 %v419
        %439 = vmatpush.msra.mxu0 %v415
        %440 = vmatpush.msra.mxu0 %v411
        %441 = vmatpush.msra.mxu0 %v407
        %442 = vmatpush.msra.mxu0 %v403
        %443 = vmatpush.msra.mxu0 %v399
        %444 = vmatpush.msra.mxu0 %v395
        %445 = vmatpush.msra.mxu0 %v391
        %446 = vmatpush.msra.mxu0 %v387
        %447 = vmatpush.msra.mxu0 %v383
        %448 = vmatpush.msra.mxu0 %v379
        %449 = vmatpush.msra.mxu0 %v375
        %450 = vmatpush.msra.mxu0 %v371
        %451 = vmatpush.msra.mxu0 %v367
        %452 = vmatpush.msra.mxu0 %v363
        %453 = vmatmul.f32.gmra.mxu0 %v359
        %v454 = vpop.f32.mrf.mxu0
        %v455 = vadd.f32 %v429, %v454
        %456 = vmatmul.f32.gmra.mxu0 %v360
        %v457 = vpop.f32.mrf.mxu0
        %v458 = vadd.f32 %v429, %v457
        %459 = vmatmul.f32.gmra.mxu0 %v361
        %v460 = vpop.f32.mrf.mxu0
        %v461 = vadd.f32 %v429, %v460
        %462 = vmatmul.f32.gmra.mxu0 %v362
        %v463 = vpop.f32.mrf.mxu0
        %v464 = vadd.f32 %v429, %v463
        %465 = vdwg.mxu0
        %466 = vmatpush.msra.mxu0 %v424
        %467 = vmatpush.msra.mxu0 %v420
        %468 = vmatpush.msra.mxu0 %v416
        %469 = vmatpush.msra.mxu0 %v412
        %470 = vmatpush.msra.mxu0 %v408
        %471 = vmatpush.msra.mxu0 %v404
        %472 = vmatpush.msra.mxu0 %v400
        %473 = vmatpush.msra.mxu0 %v396
        %474 = vmatpush.msra.mxu0 %v392
        %475 = vmatpush.msra.mxu0 %v388
        %476 = vmatpush.msra.mxu0 %v384
        %477 = vmatpush.msra.mxu0 %v380
        %478 = vmatpush.msra.mxu0 %v376
        %479 = vmatpush.msra.mxu0 %v372
        %480 = vmatpush.msra.mxu0 %v368
        %481 = vmatpush.msra.mxu0 %v364
        %482 = vmatmul.f32.gmra.mxu0 %v359
        %v483 = vpop.f32.mrf.mxu0
        %v484 = vadd.f32 %v430, %v483
        %485 = vmatmul.f32.gmra.mxu0 %v360
        %v486 = vpop.f32.mrf.mxu0
        %v487 = vadd.f32 %v430, %v486
        %488 = vmatmul.f32.gmra.mxu0 %v361
        %v489 = vpop.f32.mrf.mxu0
        %v490 = vadd.f32 %v430, %v489
        %491 = vmatmul.f32.gmra.mxu0 %v362
        %v492 = vpop.f32.mrf.mxu0
        %v493 = vadd.f32 %v430, %v492
        %494 = vdwg.mxu0
        %495 = vmatpush.msra.mxu0 %v425
        %496 = vmatpush.msra.mxu0 %v421
        %497 = vmatpush.msra.mxu0 %v417
        %498 = vmatpush.msra.mxu0 %v413
        %499 = vmatpush.msra.mxu0 %v409
        %500 = vmatpush.msra.mxu0 %v405
        %501 = vmatpush.msra.mxu0 %v401
        %502 = vmatpush.msra.mxu0 %v397
        %503 = vmatpush.msra.mxu0 %v393
        %504 = vmatpush.msra.mxu0 %v389
        %505 = vmatpush.msra.mxu0 %v385
        %506 = vmatpush.msra.mxu0 %v381
        %507 = vmatpush.msra.mxu0 %v377
        %508 = vmatpush.msra.mxu0 %v373
        %509 = vmatpush.msra.mxu0 %v369
        %510 = vmatpush.msra.mxu0 %v365
        %511 = vmatmul.f32.gmra.mxu0 %v359
        %v512 = vpop.f32.mrf.mxu0
        %v513 = vadd.f32 %v431, %v512
        %514 = vmatmul.f32.gmra.mxu0 %v360
        %v515 = vpop.f32.mrf.mxu0
        %v516 = vadd.f32 %v431, %v515
        %517 = vmatmul.f32.gmra.mxu0 %v361
        %v518 = vpop.f32.mrf.mxu0
        %v519 = vadd.f32 %v431, %v518
        %520 = vmatmul.f32.gmra.mxu0 %v362
        %v521 = vpop.f32.mrf.mxu0
        %v522 = vadd.f32 %v431, %v521
        %523 = vdwg.mxu0
        %524 = vmatpush.msra.mxu0 %v426
        %525 = vmatpush.msra.mxu0 %v422
        %526 = vmatpush.msra.mxu0 %v418
        %527 = vmatpush.msra.mxu0 %v414
        %528 = vmatpush.msra.mxu0 %v410
        %529 = vmatpush.msra.mxu0 %v406
        %530 = vmatpush.msra.mxu0 %v402
        %531 = vmatpush.msra.mxu0 %v398
        %532 = vmatpush.msra.mxu0 %v394
        %533 = vmatpush.msra.mxu0 %v390
        %534 = vmatpush.msra.mxu0 %v386
        %535 = vmatpush.msra.mxu0 %v382
        %536 = vmatpush.msra.mxu0 %v378
        %537 = vmatpush.msra.mxu0 %v374
        %538 = vmatpush.msra.mxu0 %v370
        %539 = vmatpush.msra.mxu0 %v366
        %540 = vmatmul.f32.gmra.mxu0 %v359
        %v541 = vpop.f32.mrf.mxu0
        %v542 = vadd.f32 %v432, %v541
        %543 = vmatmul.f32.gmra.mxu0 %v360
        %v544 = vpop.f32.mrf.mxu0
        %v545 = vadd.f32 %v432, %v544
        %546 = vmatmul.f32.gmra.mxu0 %v361
        %v547 = vpop.f32.mrf.mxu0
        %v548 = vadd.f32 %v432, %v547
        %549 = vmatmul.f32.gmra.mxu0 %v362
        %v550 = vpop.f32.mrf.mxu0
        %v551 = vadd.f32 %v432, %v550
        %552 = vdwg.mxu0
        %553 = vst [vmem:[#allocation2] sm:$0xff] %v455
        %554 = vst [vmem:[#allocation2 + $0x8] sm:$0xff] %v484
        %555 = vst [vmem:[#allocation2 + $0x10] sm:$0xff] %v513
        %556 = vst [vmem:[#allocation2 + $0x18] sm:$0xff] %v542
        %557 = vst [vmem:[#allocation2 + $0x20] sm:$0xff] %v458
        %558 = vst [vmem:[#allocation2 + $0x28] sm:$0xff] %v487
        %559 = vst [vmem:[#allocation2 + $0x30] sm:$0xff] %v516
        %560 = vst [vmem:[#allocation2 + $0x38] sm:$0xff] %v545
        %561 = vst [vmem:[#allocation2 + $0x40] sm:$0xff] %v461
        %562 = vst [vmem:[#allocation2 + $0x48] sm:$0xff] %v490
        %563 = vst [vmem:[#allocation2 + $0x50] sm:$0xff] %v519
        %564 = vst [vmem:[#allocation2 + $0x58] sm:$0xff] %v548
        %565 = vst [vmem:[#allocation2 + $0x60] sm:$0xff] %v464
        %566 = vst [vmem:[#allocation2 + $0x68] sm:$0xff] %v493
        %567 = vst [vmem:[#allocation2 + $0x70] sm:$0xff] %v522
        %568 = vst [vmem:[#allocation2 + $0x78] sm:$0xff] %v551
        %v569 = vld [vmem:[#allocation10] sm:$0xff]
        %v570 = vld [vmem:[#allocation10 + $0x8] sm:$0xff]
        %v571 = vld [vmem:[#allocation10 + $0x10] sm:$0xff]
        %v572 = vld [vmem:[#allocation10 + $0x18] sm:$0xff]
        %v573 = vld [vmem:[#allocation10 + $0x20] sm:$0xff]
        %v574 = vld [vmem:[#allocation10 + $0x28] sm:$0xff]
        %v575 = vld [vmem:[#allocation10 + $0x30] sm:$0xff]
        %v576 = vld [vmem:[#allocation10 + $0x38] sm:$0xff]
        %v577 = vld [vmem:[#allocation10 + $0x40] sm:$0xff]
        %v578 = vld [vmem:[#allocation10 + $0x48] sm:$0xff]
        %v579 = vld [vmem:[#allocation10 + $0x50] sm:$0xff]
        %v580 = vld [vmem:[#allocation10 + $0x58] sm:$0xff]
        %v581 = vld [vmem:[#allocation10 + $0x60] sm:$0xff]
        %v582 = vld [vmem:[#allocation10 + $0x68] sm:$0xff]
        %v583 = vld [vmem:[#allocation10 + $0x70] sm:$0xff]
        %v584 = vld [vmem:[#allocation10 + $0x78] sm:$0xff]
        %v585 = vld [vmem:[#allocation10 + $0x80] sm:$0xff]
        %v586 = vld [vmem:[#allocation10 + $0x88] sm:$0xff]
        %v587 = vld [vmem:[#allocation10 + $0x90] sm:$0xff]
        %v588 = vld [vmem:[#allocation10 + $0x98] sm:$0xff]
        %v589 = vld [vmem:[#allocation10 + $0xa0] sm:$0xff]
        %v590 = vld [vmem:[#allocation10 + $0xa8] sm:$0xff]
        %v591 = vld [vmem:[#allocation10 + $0xb0] sm:$0xff]
        %v592 = vld [vmem:[#allocation10 + $0xb8] sm:$0xff]
        %v593 = vld [vmem:[#allocation10 + $0xc0] sm:$0xff]
        %v594 = vld [vmem:[#allocation10 + $0xc8] sm:$0xff]
        %v595 = vld [vmem:[#allocation10 + $0xd0] sm:$0xff]
        %v596 = vld [vmem:[#allocation10 + $0xd8] sm:$0xff]
        %v597 = vld [vmem:[#allocation10 + $0xe0] sm:$0xff]
        %v598 = vld [vmem:[#allocation10 + $0xe8] sm:$0xff]
        %v599 = vld [vmem:[#allocation10 + $0xf0] sm:$0xff]
        %v600 = vld [vmem:[#allocation10 + $0xf8] sm:$0xff]
        %v601 = vld [vmem:[#allocation10 + $0x100] sm:$0xff]
        %v602 = vld [vmem:[#allocation10 + $0x108] sm:$0xff]
        %v603 = vld [vmem:[#allocation10 + $0x110] sm:$0xff]
        %v604 = vld [vmem:[#allocation10 + $0x118] sm:$0xff]
        %v605 = vld [vmem:[#allocation10 + $0x120] sm:$0xff]
        %v606 = vld [vmem:[#allocation10 + $0x128] sm:$0xff]
        %v607 = vld [vmem:[#allocation10 + $0x130] sm:$0xff]
        %v608 = vld [vmem:[#allocation10 + $0x138] sm:$0xff]
        %v609 = vld [vmem:[#allocation10 + $0x140] sm:$0xff]
        %v610 = vld [vmem:[#allocation10 + $0x148] sm:$0xff]
        %v611 = vld [vmem:[#allocation10 + $0x150] sm:$0xff]
        %v612 = vld [vmem:[#allocation10 + $0x158] sm:$0xff]
        %v613 = vld [vmem:[#allocation10 + $0x160] sm:$0xff]
        %v614 = vld [vmem:[#allocation10 + $0x168] sm:$0xff]
        %v615 = vld [vmem:[#allocation10 + $0x170] sm:$0xff]
        %v616 = vld [vmem:[#allocation10 + $0x178] sm:$0xff]
        %v617 = vld [vmem:[#allocation10 + $0x180] sm:$0xff]
        %v618 = vld [vmem:[#allocation10 + $0x188] sm:$0xff]
        %v619 = vld [vmem:[#allocation10 + $0x190] sm:$0xff]
        %v620 = vld [vmem:[#allocation10 + $0x198] sm:$0xff]
        %v621 = vld [vmem:[#allocation10 + $0x1a0] sm:$0xff]
        %v622 = vld [vmem:[#allocation10 + $0x1a8] sm:$0xff]
        %v623 = vld [vmem:[#allocation10 + $0x1b0] sm:$0xff]
        %v624 = vld [vmem:[#allocation10 + $0x1b8] sm:$0xff]
        %v625 = vld [vmem:[#allocation10 + $0x1c0] sm:$0xff]
        %v626 = vld [vmem:[#allocation10 + $0x1c8] sm:$0xff]
        %v627 = vld [vmem:[#allocation10 + $0x1d0] sm:$0xff]
        %v628 = vld [vmem:[#allocation10 + $0x1d8] sm:$0xff]
        %v629 = vld [vmem:[#allocation10 + $0x1e0] sm:$0xff]
        %v630 = vld [vmem:[#allocation10 + $0x1e8] sm:$0xff]
        %v631 = vld [vmem:[#allocation10 + $0x1f0] sm:$0xff]
        %v632 = vld [vmem:[#allocation10 + $0x1f8] sm:$0xff]
        %v633 = vld [vmem:[#allocation13] sm:$0xff]
        %v634 = vld [vmem:[#allocation14] sm:$0xff]
        %v635 = vld [vmem:[#allocation2] sm:$0xff]
        %v636 = vld [vmem:[#allocation2 + $0x8] sm:$0xff]
        %v637 = vld [vmem:[#allocation2 + $0x10] sm:$0xff]
        %v638 = vld [vmem:[#allocation2 + $0x18] sm:$0xff]
        %639 = vmatpush.msra.mxu0 %v629
        %640 = vmatpush.msra.mxu0 %v625
        %641 = vmatpush.msra.mxu0 %v621
        %642 = vmatpush.msra.mxu0 %v617
        %643 = vmatpush.msra.mxu0 %v613
        %644 = vmatpush.msra.mxu0 %v609
        %645 = vmatpush.msra.mxu0 %v605
        %646 = vmatpush.msra.mxu0 %v601
        %647 = vmatpush.msra.mxu0 %v597
        %648 = vmatpush.msra.mxu0 %v593
        %649 = vmatpush.msra.mxu0 %v589
        %650 = vmatpush.msra.mxu0 %v585
        %651 = vmatpush.msra.mxu0 %v581
        %652 = vmatpush.msra.mxu0 %v577
        %653 = vmatpush.msra.mxu0 %v573
        %654 = vmatpush.msra.mxu0 %v569
        %655 = vmatmul.f32.gmra.mxu0 %v633
        %v656 = vpop.f32.mrf.mxu0
        %v657 = vadd.f32 0.0, %v656
        %658 = vdwg.mxu0
        %659 = vmatpush.msra.mxu0 %v630
        %660 = vmatpush.msra.mxu0 %v626
        %661 = vmatpush.msra.mxu0 %v622
        %662 = vmatpush.msra.mxu0 %v618
        %663 = vmatpush.msra.mxu0 %v614
        %664 = vmatpush.msra.mxu0 %v610
        %665 = vmatpush.msra.mxu0 %v606
        %666 = vmatpush.msra.mxu0 %v602
        %667 = vmatpush.msra.mxu0 %v598
        %668 = vmatpush.msra.mxu0 %v594
        %669 = vmatpush.msra.mxu0 %v590
        %670 = vmatpush.msra.mxu0 %v586
        %671 = vmatpush.msra.mxu0 %v582
        %672 = vmatpush.msra.mxu0 %v578
        %673 = vmatpush.msra.mxu0 %v574
        %674 = vmatpush.msra.mxu0 %v570
        %675 = vmatmul.f32.gmra.mxu0 %v633
        %v676 = vpop.f32.mrf.mxu0
        %v677 = vadd.f32 0.0, %v676
        %678 = vdwg.mxu0
        %679 = vmatpush.msra.mxu0 %v631
        %680 = vmatpush.msra.mxu0 %v627
        %681 = vmatpush.msra.mxu0 %v623
        %682 = vmatpush.msra.mxu0 %v619
        %683 = vmatpush.msra.mxu0 %v615
        %684 = vmatpush.msra.mxu0 %v611
        %685 = vmatpush.msra.mxu0 %v607
        %686 = vmatpush.msra.mxu0 %v603
        %687 = vmatpush.msra.mxu0 %v599
        %688 = vmatpush.msra.mxu0 %v595
        %689 = vmatpush.msra.mxu0 %v591
        %690 = vmatpush.msra.mxu0 %v587
        %691 = vmatpush.msra.mxu0 %v583
        %692 = vmatpush.msra.mxu0 %v579
        %693 = vmatpush.msra.mxu0 %v575
        %694 = vmatpush.msra.mxu0 %v571
        %695 = vmatmul.f32.gmra.mxu0 %v633
        %v696 = vpop.f32.mrf.mxu0
        %v697 = vadd.f32 0.0, %v696
        %698 = vdwg.mxu0
        %699 = vmatpush.msra.mxu0 %v632
        %700 = vmatpush.msra.mxu0 %v628
        %701 = vmatpush.msra.mxu0 %v624
        %702 = vmatpush.msra.mxu0 %v620
        %703 = vmatpush.msra.mxu0 %v616
        %704 = vmatpush.msra.mxu0 %v612
        %705 = vmatpush.msra.mxu0 %v608
        %706 = vmatpush.msra.mxu0 %v604
        %707 = vmatpush.msra.mxu0 %v600
        %708 = vmatpush.msra.mxu0 %v596
        %709 = vmatpush.msra.mxu0 %v592
        %710 = vmatpush.msra.mxu0 %v588
        %711 = vmatpush.msra.mxu0 %v584
        %712 = vmatpush.msra.mxu0 %v580
        %713 = vmatpush.msra.mxu0 %v576
        %714 = vmatpush.msra.mxu0 %v572
        %715 = vmatmul.f32.gmra.mxu0 %v633
        %v716 = vpop.f32.mrf.mxu0
        %v717 = vadd.f32 0.0, %v716
        %718 = vdwg.mxu0
        %v719 = vadd.f32 %v635, %v657
        %v720 = vadd.f32 %v636, %v677
        %v721 = vadd.f32 %v637, %v697
        %v722 = vadd.f32 %v638, %v717
        %v723 = vmul.f32 %v719, 0.5
        %v724 = vtanh.pop %v723
        %v725 = vadd.f32 %v724, 1.0
        %v726 = vmul.f32 %v725, 0.5
        %v727 = vmul.f32 %v720, 0.5
        %v728 = vtanh.pop %v727
        %v729 = vadd.f32 %v728, 1.0
        %v730 = vmul.f32 %v729, 0.5
        %v731 = vtanh.pop %v721
        %v732 = vmul.f32 %v722, 0.5
        %v733 = vtanh.pop %v732
        %v734 = vadd.f32 %v733, 1.0
        %v735 = vmul.f32 %v734, 0.5
        %v736 = vmul.f32 %v730, %v634
        %v737 = vmul.f32 %v726, %v731
        %v738 = vadd.f32 %v736, %v737
        %v739 = vtanh.pop %v738
        %v740 = vmul.f32 %v735, %v739
        %s741 = smul.u32 %s26, 4
        %p742 = scmp.lt.s32.totalorder %s741, 10
        %s743 = scalar_select %p742, 1, 0
        %v744 = vstv %s743
        %vm745 = vcmp.eq.s32.totalorder %v744, 1
        %v746 = vsel %vm745, %v740, %v633
        %v747 = vsel %vm745, %v738, %v634
        %748 = vst [vmem:[#allocation3] sm:$0xff] %v746
        %s749 = scalar_lea.vmem [#allocation2], 32
        %v750 = vld [vmem:[%s749] sm:$0xff]
        %v751 = vld [vmem:[%s749 + $0x8] sm:$0xff]
        %v752 = vld [vmem:[%s749 + $0x10] sm:$0xff]
        %v753 = vld [vmem:[%s749 + $0x18] sm:$0xff]
        %754 = vmatpush.msra.mxu0 %v629
        %755 = vmatpush.msra.mxu0 %v625
        %756 = vmatpush.msra.mxu0 %v621
        %757 = vmatpush.msra.mxu0 %v617
        %758 = vmatpush.msra.mxu0 %v613
        %759 = vmatpush.msra.mxu0 %v609
        %760 = vmatpush.msra.mxu0 %v605
        %761 = vmatpush.msra.mxu0 %v601
        %762 = vmatpush.msra.mxu0 %v597
        %763 = vmatpush.msra.mxu0 %v593
        %764 = vmatpush.msra.mxu0 %v589
        %765 = vmatpush.msra.mxu0 %v585
        %766 = vmatpush.msra.mxu0 %v581
        %767 = vmatpush.msra.mxu0 %v577
        %768 = vmatpush.msra.mxu0 %v573
        %769 = vmatpush.msra.mxu0 %v569
        %770 = vmatmul.f32.gmra.mxu0 %v746
        %v771 = vpop.f32.mrf.mxu0
        %v772 = vadd.f32 0.0, %v771
        %773 = vdwg.mxu0
        %774 = vmatpush.msra.mxu0 %v630
        %775 = vmatpush.msra.mxu0 %v626
        %776 = vmatpush.msra.mxu0 %v622
        %777 = vmatpush.msra.mxu0 %v618
        %778 = vmatpush.msra.mxu0 %v614
        %779 = vmatpush.msra.mxu0 %v610
        %780 = vmatpush.msra.mxu0 %v606
        %781 = vmatpush.msra.mxu0 %v602
        %782 = vmatpush.msra.mxu0 %v598
        %783 = vmatpush.msra.mxu0 %v594
        %784 = vmatpush.msra.mxu0 %v590
        %785 = vmatpush.msra.mxu0 %v586
        %786 = vmatpush.msra.mxu0 %v582
        %787 = vmatpush.msra.mxu0 %v578
        %788 = vmatpush.msra.mxu0 %v574
        %789 = vmatpush.msra.mxu0 %v570
        %790 = vmatmul.f32.gmra.mxu0 %v746
        %v791 = vpop.f32.mrf.mxu0
        %v792 = vadd.f32 0.0, %v791
        %793 = vdwg.mxu0
        %794 = vmatpush.msra.mxu0 %v631
        %795 = vmatpush.msra.mxu0 %v627
        %796 = vmatpush.msra.mxu0 %v623
        %797 = vmatpush.msra.mxu0 %v619
        %798 = vmatpush.msra.mxu0 %v615
        %799 = vmatpush.msra.mxu0 %v611
        %800 = vmatpush.msra.mxu0 %v607
        %801 = vmatpush.msra.mxu0 %v603
        %802 = vmatpush.msra.mxu0 %v599
        %803 = vmatpush.msra.mxu0 %v595
        %804 = vmatpush.msra.mxu0 %v591
        %805 = vmatpush.msra.mxu0 %v587
        %806 = vmatpush.msra.mxu0 %v583
        %807 = vmatpush.msra.mxu0 %v579
        %808 = vmatpush.msra.mxu0 %v575
        %809 = vmatpush.msra.mxu0 %v571
        %810 = vmatmul.f32.gmra.mxu0 %v746
        %v811 = vpop.f32.mrf.mxu0
        %v812 = vadd.f32 0.0, %v811
        %813 = vdwg.mxu0
        %814 = vmatpush.msra.mxu0 %v632
        %815 = vmatpush.msra.mxu0 %v628
        %816 = vmatpush.msra.mxu0 %v624
        %817 = vmatpush.msra.mxu0 %v620
        %818 = vmatpush.msra.mxu0 %v616
        %819 = vmatpush.msra.mxu0 %v612
        %820 = vmatpush.msra.mxu0 %v608
        %821 = vmatpush.msra.mxu0 %v604
        %822 = vmatpush.msra.mxu0 %v600
        %823 = vmatpush.msra.mxu0 %v596
        %824 = vmatpush.msra.mxu0 %v592
        %825 = vmatpush.msra.mxu0 %v588
        %826 = vmatpush.msra.mxu0 %v584
        %827 = vmatpush.msra.mxu0 %v580
        %828 = vmatpush.msra.mxu0 %v576
        %829 = vmatpush.msra.mxu0 %v572
        %830 = vmatmul.f32.gmra.mxu0 %v746
        %v831 = vpop.f32.mrf.mxu0
        %v832 = vadd.f32 0.0, %v831
        %833 = vdwg.mxu0
        %v834 = vadd.f32 %v750, %v772
        %v835 = vadd.f32 %v751, %v792
        %v836 = vadd.f32 %v752, %v812
        %v837 = vadd.f32 %v753, %v832
        %v838 = vmul.f32 %v834, 0.5
        %v839 = vtanh.pop %v838
        %v840 = vadd.f32 %v839, 1.0
        %v841 = vmul.f32 %v840, 0.5
        %v842 = vmul.f32 %v835, 0.5
        %v843 = vtanh.pop %v842
        %v844 = vadd.f32 %v843, 1.0
        %v845 = vmul.f32 %v844, 0.5
        %v846 = vtanh.pop %v836
        %v847 = vmul.f32 %v837, 0.5
        %v848 = vtanh.pop %v847
        %v849 = vadd.f32 %v848, 1.0
        %v850 = vmul.f32 %v849, 0.5
        %v851 = vmul.f32 %v845, %v747
        %v852 = vmul.f32 %v841, %v846
        %v853 = vadd.f32 %v851, %v852
        %v854 = vtanh.pop %v853
        %v855 = vmul.f32 %v850, %v854
        %s856 = sadd.s32 %s741, 1
        %p857 = scmp.lt.s32.totalorder %s856, 10
        %s858 = scalar_select %p857, 1, 0
        %v859 = vstv %s858
        %vm860 = vcmp.eq.s32.totalorder %v859, 1
        %v861 = vsel %vm860, %v855, %v746
        %v862 = vsel %vm860, %v853, %v747
        %s863 = scalar_lea.vmem [#allocation3], 8
        %864 = vst [vmem:[%s863] sm:$0xff] %v861
        %s865 = scalar_lea.vmem [#allocation2], 64
        %v866 = vld [vmem:[%s865] sm:$0xff]
        %v867 = vld [vmem:[%s865 + $0x8] sm:$0xff]
        %v868 = vld [vmem:[%s865 + $0x10] sm:$0xff]
        %v869 = vld [vmem:[%s865 + $0x18] sm:$0xff]
        %870 = vmatpush.msra.mxu0 %v629
        %871 = vmatpush.msra.mxu0 %v625
        %872 = vmatpush.msra.mxu0 %v621
        %873 = vmatpush.msra.mxu0 %v617
        %874 = vmatpush.msra.mxu0 %v613
        %875 = vmatpush.msra.mxu0 %v609
        %876 = vmatpush.msra.mxu0 %v605
        %877 = vmatpush.msra.mxu0 %v601
        %878 = vmatpush.msra.mxu0 %v597
        %879 = vmatpush.msra.mxu0 %v593
        %880 = vmatpush.msra.mxu0 %v589
        %881 = vmatpush.msra.mxu0 %v585
        %882 = vmatpush.msra.mxu0 %v581
        %883 = vmatpush.msra.mxu0 %v577
        %884 = vmatpush.msra.mxu0 %v573
        %885 = vmatpush.msra.mxu0 %v569
        %886 = vmatmul.f32.gmra.mxu0 %v861
        %v887 = vpop.f32.mrf.mxu0
        %v888 = vadd.f32 0.0, %v887
        %889 = vdwg.mxu0
        %890 = vmatpush.msra.mxu0 %v630
        %891 = vmatpush.msra.mxu0 %v626
        %892 = vmatpush.msra.mxu0 %v622
        %893 = vmatpush.msra.mxu0 %v618
        %894 = vmatpush.msra.mxu0 %v614
        %895 = vmatpush.msra.mxu0 %v610
        %896 = vmatpush.msra.mxu0 %v606
        %897 = vmatpush.msra.mxu0 %v602
        %898 = vmatpush.msra.mxu0 %v598
        %899 = vmatpush.msra.mxu0 %v594
        %900 = vmatpush.msra.mxu0 %v590
        %901 = vmatpush.msra.mxu0 %v586
        %902 = vmatpush.msra.mxu0 %v582
        %903 = vmatpush.msra.mxu0 %v578
        %904 = vmatpush.msra.mxu0 %v574
        %905 = vmatpush.msra.mxu0 %v570
        %906 = vmatmul.f32.gmra.mxu0 %v861
        %v907 = vpop.f32.mrf.mxu0
        %v908 = vadd.f32 0.0, %v907
        %909 = vdwg.mxu0
        %910 = vmatpush.msra.mxu0 %v631
        %911 = vmatpush.msra.mxu0 %v627
        %912 = vmatpush.msra.mxu0 %v623
        %913 = vmatpush.msra.mxu0 %v619
        %914 = vmatpush.msra.mxu0 %v615
        %915 = vmatpush.msra.mxu0 %v611
        %916 = vmatpush.msra.mxu0 %v607
        %917 = vmatpush.msra.mxu0 %v603
        %918 = vmatpush.msra.mxu0 %v599
        %919 = vmatpush.msra.mxu0 %v595
        %920 = vmatpush.msra.mxu0 %v591
        %921 = vmatpush.msra.mxu0 %v587
        %922 = vmatpush.msra.mxu0 %v583
        %923 = vmatpush.msra.mxu0 %v579
        %924 = vmatpush.msra.mxu0 %v575
        %925 = vmatpush.msra.mxu0 %v571
        %926 = vmatmul.f32.gmra.mxu0 %v861
        %v927 = vpop.f32.mrf.mxu0
        %v928 = vadd.f32 0.0, %v927
        %929 = vdwg.mxu0
        %930 = vmatpush.msra.mxu0 %v632
        %931 = vmatpush.msra.mxu0 %v628
        %932 = vmatpush.msra.mxu0 %v624
        %933 = vmatpush.msra.mxu0 %v620
        %934 = vmatpush.msra.mxu0 %v616
        %935 = vmatpush.msra.mxu0 %v612
        %936 = vmatpush.msra.mxu0 %v608
        %937 = vmatpush.msra.mxu0 %v604
        %938 = vmatpush.msra.mxu0 %v600
        %939 = vmatpush.msra.mxu0 %v596
        %940 = vmatpush.msra.mxu0 %v592
        %941 = vmatpush.msra.mxu0 %v588
        %942 = vmatpush.msra.mxu0 %v584
        %943 = vmatpush.msra.mxu0 %v580
        %944 = vmatpush.msra.mxu0 %v576
        %945 = vmatpush.msra.mxu0 %v572
        %946 = vmatmul.f32.gmra.mxu0 %v861
        %v947 = vpop.f32.mrf.mxu0
        %v948 = vadd.f32 0.0, %v947
        %949 = vdwg.mxu0
        %v950 = vadd.f32 %v866, %v888
        %v951 = vadd.f32 %v867, %v908
        %v952 = vadd.f32 %v868, %v928
        %v953 = vadd.f32 %v869, %v948
        %v954 = vmul.f32 %v950, 0.5
        %v955 = vtanh.pop %v954
        %v956 = vadd.f32 %v955, 1.0
        %v957 = vmul.f32 %v956, 0.5
        %v958 = vmul.f32 %v951, 0.5
        %v959 = vtanh.pop %v958
        %v960 = vadd.f32 %v959, 1.0
        %v961 = vmul.f32 %v960, 0.5
        %v962 = vtanh.pop %v952
        %v963 = vmul.f32 %v953, 0.5
        %v964 = vtanh.pop %v963
        %v965 = vadd.f32 %v964, 1.0
        %v966 = vmul.f32 %v965, 0.5
        %v967 = vmul.f32 %v961, %v862
        %v968 = vmul.f32 %v957, %v962
        %v969 = vadd.f32 %v967, %v968
        %v970 = vtanh.pop %v969
        %v971 = vmul.f32 %v966, %v970
        %s972 = sadd.s32 %s741, 2
        %p973 = scmp.lt.s32.totalorder %s972, 10
        %s974 = scalar_select %p973, 1, 0
        %v975 = vstv %s974
        %vm976 = vcmp.eq.s32.totalorder %v975, 1
        %v977 = vsel %vm976, %v971, %v861
        %v978 = vsel %vm976, %v969, %v862
        %s979 = scalar_lea.vmem [#allocation3], 16
        %980 = vst [vmem:[%s979] sm:$0xff] %v977
        %s981 = scalar_lea.vmem [#allocation2], 96
        %v982 = vld [vmem:[%s981] sm:$0xff]
        %v983 = vld [vmem:[%s981 + $0x8] sm:$0xff]
        %v984 = vld [vmem:[%s981 + $0x10] sm:$0xff]
        %v985 = vld [vmem:[%s981 + $0x18] sm:$0xff]
        %986 = vmatpush.msra.mxu0 %v629
        %987 = vmatpush.msra.mxu0 %v625
        %988 = vmatpush.msra.mxu0 %v621
        %989 = vmatpush.msra.mxu0 %v617
        %990 = vmatpush.msra.mxu0 %v613
        %991 = vmatpush.msra.mxu0 %v609
        %992 = vmatpush.msra.mxu0 %v605
        %993 = vmatpush.msra.mxu0 %v601
        %994 = vmatpush.msra.mxu0 %v597
        %995 = vmatpush.msra.mxu0 %v593
        %996 = vmatpush.msra.mxu0 %v589
        %997 = vmatpush.msra.mxu0 %v585
        %998 = vmatpush.msra.mxu0 %v581
        %999 = vmatpush.msra.mxu0 %v577
        %1000 = vmatpush.msra.mxu0 %v573
        %1001 = vmatpush.msra.mxu0 %v569
        %1002 = vmatmul.f32.gmra.mxu0 %v977
        %v1003 = vpop.f32.mrf.mxu0
        %v1004 = vadd.f32 0.0, %v1003
        %1005 = vdwg.mxu0
        %1006 = vmatpush.msra.mxu0 %v630
        %1007 = vmatpush.msra.mxu0 %v626
        %1008 = vmatpush.msra.mxu0 %v622
        %1009 = vmatpush.msra.mxu0 %v618
        %1010 = vmatpush.msra.mxu0 %v614
        %1011 = vmatpush.msra.mxu0 %v610
        %1012 = vmatpush.msra.mxu0 %v606
        %1013 = vmatpush.msra.mxu0 %v602
        %1014 = vmatpush.msra.mxu0 %v598
        %1015 = vmatpush.msra.mxu0 %v594
        %1016 = vmatpush.msra.mxu0 %v590
        %1017 = vmatpush.msra.mxu0 %v586
        %1018 = vmatpush.msra.mxu0 %v582
        %1019 = vmatpush.msra.mxu0 %v578
        %1020 = vmatpush.msra.mxu0 %v574
        %1021 = vmatpush.msra.mxu0 %v570
        %1022 = vmatmul.f32.gmra.mxu0 %v977
        %v1023 = vpop.f32.mrf.mxu0
        %v1024 = vadd.f32 0.0, %v1023
        %1025 = vdwg.mxu0
        %1026 = vmatpush.msra.mxu0 %v631
        %1027 = vmatpush.msra.mxu0 %v627
        %1028 = vmatpush.msra.mxu0 %v623
        %1029 = vmatpush.msra.mxu0 %v619
        %1030 = vmatpush.msra.mxu0 %v615
        %1031 = vmatpush.msra.mxu0 %v611
        %1032 = vmatpush.msra.mxu0 %v607
        %1033 = vmatpush.msra.mxu0 %v603
        %1034 = vmatpush.msra.mxu0 %v599
        %1035 = vmatpush.msra.mxu0 %v595
        %1036 = vmatpush.msra.mxu0 %v591
        %1037 = vmatpush.msra.mxu0 %v587
        %1038 = vmatpush.msra.mxu0 %v583
        %1039 = vmatpush.msra.mxu0 %v579
        %1040 = vmatpush.msra.mxu0 %v575
        %1041 = vmatpush.msra.mxu0 %v571
        %1042 = vmatmul.f32.gmra.mxu0 %v977
        %v1043 = vpop.f32.mrf.mxu0
        %v1044 = vadd.f32 0.0, %v1043
        %1045 = vdwg.mxu0
        %1046 = vmatpush.msra.mxu0 %v632
        %1047 = vmatpush.msra.mxu0 %v628
        %1048 = vmatpush.msra.mxu0 %v624
        %1049 = vmatpush.msra.mxu0 %v620
        %1050 = vmatpush.msra.mxu0 %v616
        %1051 = vmatpush.msra.mxu0 %v612
        %1052 = vmatpush.msra.mxu0 %v608
        %1053 = vmatpush.msra.mxu0 %v604
        %1054 = vmatpush.msra.mxu0 %v600
        %1055 = vmatpush.msra.mxu0 %v596
        %1056 = vmatpush.msra.mxu0 %v592
        %1057 = vmatpush.msra.mxu0 %v588
        %1058 = vmatpush.msra.mxu0 %v584
        %1059 = vmatpush.msra.mxu0 %v580
        %1060 = vmatpush.msra.mxu0 %v576
        %1061 = vmatpush.msra.mxu0 %v572
        %1062 = vmatmul.f32.gmra.mxu0 %v977
        %v1063 = vpop.f32.mrf.mxu0
        %v1064 = vadd.f32 0.0, %v1063
        %1065 = vdwg.mxu0
        %v1066 = vadd.f32 %v982, %v1004
        %v1067 = vadd.f32 %v983, %v1024
        %v1068 = vadd.f32 %v984, %v1044
        %v1069 = vadd.f32 %v985, %v1064
        %v1070 = vmul.f32 %v1066, 0.5
        %v1071 = vtanh.pop %v1070
        %v1072 = vadd.f32 %v1071, 1.0
        %v1073 = vmul.f32 %v1072, 0.5
        %v1074 = vmul.f32 %v1067, 0.5
        %v1075 = vtanh.pop %v1074
        %v1076 = vadd.f32 %v1075, 1.0
        %v1077 = vmul.f32 %v1076, 0.5
        %v1078 = vtanh.pop %v1068
        %v1079 = vmul.f32 %v1069, 0.5
        %v1080 = vtanh.pop %v1079
        %v1081 = vadd.f32 %v1080, 1.0
        %v1082 = vmul.f32 %v1081, 0.5
        %v1083 = vmul.f32 %v1077, %v978
        %v1084 = vmul.f32 %v1073, %v1078
        %v1085 = vadd.f32 %v1083, %v1084
        %v1086 = vtanh.pop %v1085
        %v1087 = vmul.f32 %v1082, %v1086
        %s1088 = sadd.s32 %s741, 3
        %p1089 = scmp.lt.s32.totalorder %s1088, 10
        %s1090 = scalar_select %p1089, 1, 0
        %v1091 = vstv %s1090
        %vm1092 = vcmp.eq.s32.totalorder %v1091, 1
        %v1093 = vsel %vm1092, %v1087, %v977
        %v1094 = vsel %vm1092, %v1085, %v978
        %s1095 = scalar_lea.vmem [#allocation3], 24
        %1096 = vst [vmem:[%s1095] sm:$0xff] %v1093
        %1097 = vst [vmem:[#allocation13] sm:$0xff] %v1093
        %1098 = vst [vmem:[#allocation14] sm:$0xff] %v1094
        %v1099 = vld [vmem:[#allocation3] sm:$0xff]
        %v1100 = vld [vmem:[#allocation3 + $0x8] sm:$0xff]
        %v1101 = vld [vmem:[#allocation3 + $0x10] sm:$0xff]
        %v1102 = vld [vmem:[#allocation3 + $0x18] sm:$0xff]
        %v1103 = vld [vmem:[#allocation12] sm:$0xff]
        %v1104 = vld [vmem:[#allocation12 + $0x8] sm:$0xff]
        %v1105 = vld [vmem:[#allocation12 + $0x10] sm:$0xff]
        %v1106 = vld [vmem:[#allocation12 + $0x18] sm:$0xff]
        %v1107 = vld [vmem:[#allocation12 + $0x20] sm:$0xff]
        %v1108 = vld [vmem:[#allocation12 + $0x28] sm:$0xff]
        %v1109 = vld [vmem:[#allocation12 + $0x30] sm:$0xff]
        %v1110 = vld [vmem:[#allocation12 + $0x38] sm:$0xff]
        %v1111 = vld [vmem:[#allocation12 + $0x40] sm:$0xff]
        %v1112 = vld [vmem:[#allocation12 + $0x48] sm:$0xff]
        %v1113 = vld [vmem:[#allocation12 + $0x50] sm:$0xff]
        %v1114 = vld [vmem:[#allocation12 + $0x58] sm:$0xff]
        %v1115 = vld [vmem:[#allocation12 + $0x60] sm:$0xff]
        %v1116 = vld [vmem:[#allocation12 + $0x68] sm:$0xff]
        %v1117 = vld [vmem:[#allocation12 + $0x70] sm:$0xff]
        %v1118 = vld [vmem:[#allocation12 + $0x78] sm:$0xff]
        %v1119 = vld [vmem:[#allocation12 + $0x80] sm:$0xff]
        %v1120 = vld [vmem:[#allocation12 + $0x88] sm:$0xff]
        %v1121 = vld [vmem:[#allocation12 + $0x90] sm:$0xff]
        %v1122 = vld [vmem:[#allocation12 + $0x98] sm:$0xff]
        %v1123 = vld [vmem:[#allocation12 + $0xa0] sm:$0xff]
        %v1124 = vld [vmem:[#allocation12 + $0xa8] sm:$0xff]
        %v1125 = vld [vmem:[#allocation12 + $0xb0] sm:$0xff]
        %v1126 = vld [vmem:[#allocation12 + $0xb8] sm:$0xff]
        %v1127 = vld [vmem:[#allocation12 + $0xc0] sm:$0xff]
        %v1128 = vld [vmem:[#allocation12 + $0xc8] sm:$0xff]
        %v1129 = vld [vmem:[#allocation12 + $0xd0] sm:$0xff]
        %v1130 = vld [vmem:[#allocation12 + $0xd8] sm:$0xff]
        %v1131 = vld [vmem:[#allocation12 + $0xe0] sm:$0xff]
        %v1132 = vld [vmem:[#allocation12 + $0xe8] sm:$0xff]
        %v1133 = vld [vmem:[#allocation12 + $0xf0] sm:$0xff]
        %v1134 = vld [vmem:[#allocation12 + $0xf8] sm:$0xff]
        %v1135 = vld [vmem:[#allocation12 + $0x100] sm:$0xff]
        %v1136 = vld [vmem:[#allocation12 + $0x108] sm:$0xff]
        %v1137 = vld [vmem:[#allocation12 + $0x110] sm:$0xff]
        %v1138 = vld [vmem:[#allocation12 + $0x118] sm:$0xff]
        %v1139 = vld [vmem:[#allocation12 + $0x120] sm:$0xff]
        %v1140 = vld [vmem:[#allocation12 + $0x128] sm:$0xff]
        %v1141 = vld [vmem:[#allocation12 + $0x130] sm:$0xff]
        %v1142 = vld [vmem:[#allocation12 + $0x138] sm:$0xff]
        %v1143 = vld [vmem:[#allocation12 + $0x140] sm:$0xff]
        %v1144 = vld [vmem:[#allocation12 + $0x148] sm:$0xff]
        %v1145 = vld [vmem:[#allocation12 + $0x150] sm:$0xff]
        %v1146 = vld [vmem:[#allocation12 + $0x158] sm:$0xff]
        %v1147 = vld [vmem:[#allocation12 + $0x160] sm:$0xff]
        %v1148 = vld [vmem:[#allocation12 + $0x168] sm:$0xff]
        %v1149 = vld [vmem:[#allocation12 + $0x170] sm:$0xff]
        %v1150 = vld [vmem:[#allocation12 + $0x178] sm:$0xff]
        %v1151 = vld [vmem:[#allocation12 + $0x180] sm:$0xff]
        %v1152 = vld [vmem:[#allocation12 + $0x188] sm:$0xff]
        %v1153 = vld [vmem:[#allocation12 + $0x190] sm:$0xff]
        %v1154 = vld [vmem:[#allocation12 + $0x198] sm:$0xff]
        %v1155 = vld [vmem:[#allocation12 + $0x1a0] sm:$0xff]
        %v1156 = vld [vmem:[#allocation12 + $0x1a8] sm:$0xff]
        %v1157 = vld [vmem:[#allocation12 + $0x1b0] sm:$0xff]
        %v1158 = vld [vmem:[#allocation12 + $0x1b8] sm:$0xff]
        %v1159 = vld [vmem:[#allocation12 + $0x1c0] sm:$0xff]
        %v1160 = vld [vmem:[#allocation12 + $0x1c8] sm:$0xff]
        %v1161 = vld [vmem:[#allocation12 + $0x1d0] sm:$0xff]
        %v1162 = vld [vmem:[#allocation12 + $0x1d8] sm:$0xff]
        %v1163 = vld [vmem:[#allocation12 + $0x1e0] sm:$0xff]
        %v1164 = vld [vmem:[#allocation12 + $0x1e8] sm:$0xff]
        %v1165 = vld [vmem:[#allocation12 + $0x1f0] sm:$0xff]
        %v1166 = vld [vmem:[#allocation12 + $0x1f8] sm:$0xff]
        %v1167 = vld [vmem:[%s5] sm:$0xf]
        %v1169 = vperm.slane %v1167, 0
        %v1170 = vperm.slane %v1167, 1
        %v1171 = vperm.slane %v1167, 2
        %v1172 = vperm.slane %v1167, 3
        %1177 = vmatpush.msra.mxu0 %v1163
        %1178 = vmatpush.msra.mxu0 %v1159
        %1179 = vmatpush.msra.mxu0 %v1155
        %1180 = vmatpush.msra.mxu0 %v1151
        %1181 = vmatpush.msra.mxu0 %v1147
        %1182 = vmatpush.msra.mxu0 %v1143
        %1183 = vmatpush.msra.mxu0 %v1139
        %1184 = vmatpush.msra.mxu0 %v1135
        %1185 = vmatpush.msra.mxu0 %v1131
        %1186 = vmatpush.msra.mxu0 %v1127
        %1187 = vmatpush.msra.mxu0 %v1123
        %1188 = vmatpush.msra.mxu0 %v1119
        %1189 = vmatpush.msra.mxu0 %v1115
        %1190 = vmatpush.msra.mxu0 %v1111
        %1191 = vmatpush.msra.mxu0 %v1107
        %1192 = vmatpush.msra.mxu0 %v1103
        %1193 = vmatmul.f32.gmra.mxu0 %v1099
        %v1194 = vpop.f32.mrf.mxu0
        %v1195 = vadd.f32 %v1169, %v1194
        %1196 = vmatmul.f32.gmra.mxu0 %v1100
        %v1197 = vpop.f32.mrf.mxu0
        %v1198 = vadd.f32 %v1169, %v1197
        %1199 = vmatmul.f32.gmra.mxu0 %v1101
        %v1200 = vpop.f32.mrf.mxu0
        %v1201 = vadd.f32 %v1169, %v1200
        %1202 = vmatmul.f32.gmra.mxu0 %v1102
        %v1203 = vpop.f32.mrf.mxu0
        %v1204 = vadd.f32 %v1169, %v1203
        %1205 = vdwg.mxu0
        %1206 = vmatpush.msra.mxu0 %v1164
        %1207 = vmatpush.msra.mxu0 %v1160
        %1208 = vmatpush.msra.mxu0 %v1156
        %1209 = vmatpush.msra.mxu0 %v1152
        %1210 = vmatpush.msra.mxu0 %v1148
        %1211 = vmatpush.msra.mxu0 %v1144
        %1212 = vmatpush.msra.mxu0 %v1140
        %1213 = vmatpush.msra.mxu0 %v1136
        %1214 = vmatpush.msra.mxu0 %v1132
        %1215 = vmatpush.msra.mxu0 %v1128
        %1216 = vmatpush.msra.mxu0 %v1124
        %1217 = vmatpush.msra.mxu0 %v1120
        %1218 = vmatpush.msra.mxu0 %v1116
        %1219 = vmatpush.msra.mxu0 %v1112
        %1220 = vmatpush.msra.mxu0 %v1108
        %1221 = vmatpush.msra.mxu0 %v1104
        %1222 = vmatmul.f32.gmra.mxu0 %v1099
        %v1223 = vpop.f32.mrf.mxu0
        %v1224 = vadd.f32 %v1170, %v1223
        %1225 = vmatmul.f32.gmra.mxu0 %v1100
        %v1226 = vpop.f32.mrf.mxu0
        %v1227 = vadd.f32 %v1170, %v1226
        %1228 = vmatmul.f32.gmra.mxu0 %v1101
        %v1229 = vpop.f32.mrf.mxu0
        %v1230 = vadd.f32 %v1170, %v1229
        %1231 = vmatmul.f32.gmra.mxu0 %v1102
        %v1232 = vpop.f32.mrf.mxu0
        %v1233 = vadd.f32 %v1170, %v1232
        %1234 = vdwg.mxu0
        %1235 = vmatpush.msra.mxu0 %v1165
        %1236 = vmatpush.msra.mxu0 %v1161
        %1237 = vmatpush.msra.mxu0 %v1157
        %1238 = vmatpush.msra.mxu0 %v1153
        %1239 = vmatpush.msra.mxu0 %v1149
        %1240 = vmatpush.msra.mxu0 %v1145
        %1241 = vmatpush.msra.mxu0 %v1141
        %1242 = vmatpush.msra.mxu0 %v1137
        %1243 = vmatpush.msra.mxu0 %v1133
        %1244 = vmatpush.msra.mxu0 %v1129
        %1245 = vmatpush.msra.mxu0 %v1125
        %1246 = vmatpush.msra.mxu0 %v1121
        %1247 = vmatpush.msra.mxu0 %v1117
        %1248 = vmatpush.msra.mxu0 %v1113
        %1249 = vmatpush.msra.mxu0 %v1109
        %1250 = vmatpush.msra.mxu0 %v1105
        %1251 = vmatmul.f32.gmra.mxu0 %v1099
        %v1252 = vpop.f32.mrf.mxu0
        %v1253 = vadd.f32 %v1171, %v1252
        %1254 = vmatmul.f32.gmra.mxu0 %v1100
        %v1255 = vpop.f32.mrf.mxu0
        %v1256 = vadd.f32 %v1171, %v1255
        %1257 = vmatmul.f32.gmra.mxu0 %v1101
        %v1258 = vpop.f32.mrf.mxu0
        %v1259 = vadd.f32 %v1171, %v1258
        %1260 = vmatmul.f32.gmra.mxu0 %v1102
        %v1261 = vpop.f32.mrf.mxu0
        %v1262 = vadd.f32 %v1171, %v1261
        %1263 = vdwg.mxu0
        %1264 = vmatpush.msra.mxu0 %v1166
        %1265 = vmatpush.msra.mxu0 %v1162
        %1266 = vmatpush.msra.mxu0 %v1158
        %1267 = vmatpush.msra.mxu0 %v1154
        %1268 = vmatpush.msra.mxu0 %v1150
        %1269 = vmatpush.msra.mxu0 %v1146
        %1270 = vmatpush.msra.mxu0 %v1142
        %1271 = vmatpush.msra.mxu0 %v1138
        %1272 = vmatpush.msra.mxu0 %v1134
        %1273 = vmatpush.msra.mxu0 %v1130
        %1274 = vmatpush.msra.mxu0 %v1126
        %1275 = vmatpush.msra.mxu0 %v1122
        %1276 = vmatpush.msra.mxu0 %v1118
        %1277 = vmatpush.msra.mxu0 %v1114
        %1278 = vmatpush.msra.mxu0 %v1110
        %1279 = vmatpush.msra.mxu0 %v1106
        %1280 = vmatmul.f32.gmra.mxu0 %v1099
        %v1281 = vpop.f32.mrf.mxu0
        %v1282 = vadd.f32 %v1172, %v1281
        %1283 = vmatmul.f32.gmra.mxu0 %v1100
        %v1284 = vpop.f32.mrf.mxu0
        %v1285 = vadd.f32 %v1172, %v1284
        %1286 = vmatmul.f32.gmra.mxu0 %v1101
        %v1287 = vpop.f32.mrf.mxu0
        %v1288 = vadd.f32 %v1172, %v1287
        %1289 = vmatmul.f32.gmra.mxu0 %v1102
        %v1290 = vpop.f32.mrf.mxu0
        %v1291 = vadd.f32 %v1172, %v1290
        %1292 = vdwg.mxu0
        %1293 = vst [vmem:[#allocation2] sm:$0xff] %v1195
        %1294 = vst [vmem:[#allocation2 + $0x8] sm:$0xff] %v1224
        %1295 = vst [vmem:[#allocation2 + $0x10] sm:$0xff] %v1253
        %1296 = vst [vmem:[#allocation2 + $0x18] sm:$0xff] %v1282
        %1297 = vst [vmem:[#allocation2 + $0x20] sm:$0xff] %v1198
        %1298 = vst [vmem:[#allocation2 + $0x28] sm:$0xff] %v1227
        %1299 = vst [vmem:[#allocation2 + $0x30] sm:$0xff] %v1256
        %1300 = vst [vmem:[#allocation2 + $0x38] sm:$0xff] %v1285
        %1301 = vst [vmem:[#allocation2 + $0x40] sm:$0xff] %v1201
        %1302 = vst [vmem:[#allocation2 + $0x48] sm:$0xff] %v1230
        %1303 = vst [vmem:[#allocation2 + $0x50] sm:$0xff] %v1259
        %1304 = vst [vmem:[#allocation2 + $0x58] sm:$0xff] %v1288
        %1305 = vst [vmem:[#allocation2 + $0x60] sm:$0xff] %v1204
        %1306 = vst [vmem:[#allocation2 + $0x68] sm:$0xff] %v1233
        %1307 = vst [vmem:[#allocation2 + $0x70] sm:$0xff] %v1262
        %1308 = vst [vmem:[#allocation2 + $0x78] sm:$0xff] %v1291
        %s1309 = scalar_lea.vmem [#allocation10], 512
        %v1310 = vld [vmem:[%s1309] sm:$0xff]
        %v1311 = vld [vmem:[%s1309 + $0x8] sm:$0xff]
        %v1312 = vld [vmem:[%s1309 + $0x10] sm:$0xff]
        %v1313 = vld [vmem:[%s1309 + $0x18] sm:$0xff]
        %v1314 = vld [vmem:[%s1309 + $0x20] sm:$0xff]
        %v1315 = vld [vmem:[%s1309 + $0x28] sm:$0xff]
        %v1316 = vld [vmem:[%s1309 + $0x30] sm:$0xff]
        %v1317 = vld [vmem:[%s1309 + $0x38] sm:$0xff]
        %v1318 = vld [vmem:[%s1309 + $0x40] sm:$0xff]
        %v1319 = vld [vmem:[%s1309 + $0x48] sm:$0xff]
        %v1320 = vld [vmem:[%s1309 + $0x50] sm:$0xff]
        %v1321 = vld [vmem:[%s1309 + $0x58] sm:$0xff]
        %v1322 = vld [vmem:[%s1309 + $0x60] sm:$0xff]
        %v1323 = vld [vmem:[%s1309 + $0x68] sm:$0xff]
        %v1324 = vld [vmem:[%s1309 + $0x70] sm:$0xff]
        %v1325 = vld [vmem:[%s1309 + $0x78] sm:$0xff]
        %v1326 = vld [vmem:[%s1309 + $0x80] sm:$0xff]
        %v1327 = vld [vmem:[%s1309 + $0x88] sm:$0xff]
        %v1328 = vld [vmem:[%s1309 + $0x90] sm:$0xff]
        %v1329 = vld [vmem:[%s1309 + $0x98] sm:$0xff]
        %v1330 = vld [vmem:[%s1309 + $0xa0] sm:$0xff]
        %v1331 = vld [vmem:[%s1309 + $0xa8] sm:$0xff]
        %v1332 = vld [vmem:[%s1309 + $0xb0] sm:$0xff]
        %v1333 = vld [vmem:[%s1309 + $0xb8] sm:$0xff]
        %v1334 = vld [vmem:[%s1309 + $0xc0] sm:$0xff]
        %v1335 = vld [vmem:[%s1309 + $0xc8] sm:$0xff]
        %v1336 = vld [vmem:[%s1309 + $0xd0] sm:$0xff]
        %v1337 = vld [vmem:[%s1309 + $0xd8] sm:$0xff]
        %v1338 = vld [vmem:[%s1309 + $0xe0] sm:$0xff]
        %v1339 = vld [vmem:[%s1309 + $0xe8] sm:$0xff]
        %v1340 = vld [vmem:[%s1309 + $0xf0] sm:$0xff]
        %v1341 = vld [vmem:[%s1309 + $0xf8] sm:$0xff]
        %v1342 = vld [vmem:[%s1309 + $0x100] sm:$0xff]
        %v1343 = vld [vmem:[%s1309 + $0x108] sm:$0xff]
        %v1344 = vld [vmem:[%s1309 + $0x110] sm:$0xff]
        %v1345 = vld [vmem:[%s1309 + $0x118] sm:$0xff]
        %v1346 = vld [vmem:[%s1309 + $0x120] sm:$0xff]
        %v1347 = vld [vmem:[%s1309 + $0x128] sm:$0xff]
        %v1348 = vld [vmem:[%s1309 + $0x130] sm:$0xff]
        %v1349 = vld [vmem:[%s1309 + $0x138] sm:$0xff]
        %v1350 = vld [vmem:[%s1309 + $0x140] sm:$0xff]
        %v1351 = vld [vmem:[%s1309 + $0x148] sm:$0xff]
        %v1352 = vld [vmem:[%s1309 + $0x150] sm:$0xff]
        %v1353 = vld [vmem:[%s1309 + $0x158] sm:$0xff]
        %v1354 = vld [vmem:[%s1309 + $0x160] sm:$0xff]
        %v1355 = vld [vmem:[%s1309 + $0x168] sm:$0xff]
        %v1356 = vld [vmem:[%s1309 + $0x170] sm:$0xff]
        %v1357 = vld [vmem:[%s1309 + $0x178] sm:$0xff]
        %v1358 = vld [vmem:[%s1309 + $0x180] sm:$0xff]
        %v1359 = vld [vmem:[%s1309 + $0x188] sm:$0xff]
        %v1360 = vld [vmem:[%s1309 + $0x190] sm:$0xff]
        %v1361 = vld [vmem:[%s1309 + $0x198] sm:$0xff]
        %v1362 = vld [vmem:[%s1309 + $0x1a0] sm:$0xff]
        %v1363 = vld [vmem:[%s1309 + $0x1a8] sm:$0xff]
        %v1364 = vld [vmem:[%s1309 + $0x1b0] sm:$0xff]
        %v1365 = vld [vmem:[%s1309 + $0x1b8] sm:$0xff]
        %v1366 = vld [vmem:[%s1309 + $0x1c0] sm:$0xff]
        %v1367 = vld [vmem:[%s1309 + $0x1c8] sm:$0xff]
        %v1368 = vld [vmem:[%s1309 + $0x1d0] sm:$0xff]
        %v1369 = vld [vmem:[%s1309 + $0x1d8] sm:$0xff]
        %v1370 = vld [vmem:[%s1309 + $0x1e0] sm:$0xff]
        %v1371 = vld [vmem:[%s1309 + $0x1e8] sm:$0xff]
        %v1372 = vld [vmem:[%s1309 + $0x1f0] sm:$0xff]
        %v1373 = vld [vmem:[%s1309 + $0x1f8] sm:$0xff]
        %s1374 = scalar_lea.vmem [#allocation13], 8
        %v1375 = vld [vmem:[%s1374] sm:$0xff]
        %s1376 = scalar_lea.vmem [#allocation14], 8
        %v1377 = vld [vmem:[%s1376] sm:$0xff]
        %v1378 = vld [vmem:[#allocation2] sm:$0xff]
        %v1379 = vld [vmem:[#allocation2 + $0x8] sm:$0xff]
        %v1380 = vld [vmem:[#allocation2 + $0x10] sm:$0xff]
        %v1381 = vld [vmem:[#allocation2 + $0x18] sm:$0xff]
        %1382 = vmatpush.msra.mxu0 %v1370
        %1383 = vmatpush.msra.mxu0 %v1366
        %1384 = vmatpush.msra.mxu0 %v1362
        %1385 = vmatpush.msra.mxu0 %v1358
        %1386 = vmatpush.msra.mxu0 %v1354
        %1387 = vmatpush.msra.mxu0 %v1350
        %1388 = vmatpush.msra.mxu0 %v1346
        %1389 = vmatpush.msra.mxu0 %v1342
        %1390 = vmatpush.msra.mxu0 %v1338
        %1391 = vmatpush.msra.mxu0 %v1334
        %1392 = vmatpush.msra.mxu0 %v1330
        %1393 = vmatpush.msra.mxu0 %v1326
        %1394 = vmatpush.msra.mxu0 %v1322
        %1395 = vmatpush.msra.mxu0 %v1318
        %1396 = vmatpush.msra.mxu0 %v1314
        %1397 = vmatpush.msra.mxu0 %v1310
        %1398 = vmatmul.f32.gmra.mxu0 %v1375
        %v1399 = vpop.f32.mrf.mxu0
        %v1400 = vadd.f32 0.0, %v1399
        %1401 = vdwg.mxu0
        %1402 = vmatpush.msra.mxu0 %v1371
        %1403 = vmatpush.msra.mxu0 %v1367
        %1404 = vmatpush.msra.mxu0 %v1363
        %1405 = vmatpush.msra.mxu0 %v1359
        %1406 = vmatpush.msra.mxu0 %v1355
        %1407 = vmatpush.msra.mxu0 %v1351
        %1408 = vmatpush.msra.mxu0 %v1347
        %1409 = vmatpush.msra.mxu0 %v1343
        %1410 = vmatpush.msra.mxu0 %v1339
        %1411 = vmatpush.msra.mxu0 %v1335
        %1412 = vmatpush.msra.mxu0 %v1331
        %1413 = vmatpush.msra.mxu0 %v1327
        %1414 = vmatpush.msra.mxu0 %v1323
        %1415 = vmatpush.msra.mxu0 %v1319
        %1416 = vmatpush.msra.mxu0 %v1315
        %1417 = vmatpush.msra.mxu0 %v1311
        %1418 = vmatmul.f32.gmra.mxu0 %v1375
        %v1419 = vpop.f32.mrf.mxu0
        %v1420 = vadd.f32 0.0, %v1419
        %1421 = vdwg.mxu0
        %1422 = vmatpush.msra.mxu0 %v1372
        %1423 = vmatpush.msra.mxu0 %v1368
        %1424 = vmatpush.msra.mxu0 %v1364
        %1425 = vmatpush.msra.mxu0 %v1360
        %1426 = vmatpush.msra.mxu0 %v1356
        %1427 = vmatpush.msra.mxu0 %v1352
        %1428 = vmatpush.msra.mxu0 %v1348
        %1429 = vmatpush.msra.mxu0 %v1344
        %1430 = vmatpush.msra.mxu0 %v1340
        %1431 = vmatpush.msra.mxu0 %v1336
        %1432 = vmatpush.msra.mxu0 %v1332
        %1433 = vmatpush.msra.mxu0 %v1328
        %1434 = vmatpush.msra.mxu0 %v1324
        %1435 = vmatpush.msra.mxu0 %v1320
        %1436 = vmatpush.msra.mxu0 %v1316
        %1437 = vmatpush.msra.mxu0 %v1312
        %1438 = vmatmul.f32.gmra.mxu0 %v1375
        %v1439 = vpop.f32.mrf.mxu0
        %v1440 = vadd.f32 0.0, %v1439
        %1441 = vdwg.mxu0
        %1442 = vmatpush.msra.mxu0 %v1373
        %1443 = vmatpush.msra.mxu0 %v1369
        %1444 = vmatpush.msra.mxu0 %v1365
        %1445 = vmatpush.msra.mxu0 %v1361
        %1446 = vmatpush.msra.mxu0 %v1357
        %1447 = vmatpush.msra.mxu0 %v1353
        %1448 = vmatpush.msra.mxu0 %v1349
        %1449 = vmatpush.msra.mxu0 %v1345
        %1450 = vmatpush.msra.mxu0 %v1341
        %1451 = vmatpush.msra.mxu0 %v1337
        %1452 = vmatpush.msra.mxu0 %v1333
        %1453 = vmatpush.msra.mxu0 %v1329
        %1454 = vmatpush.msra.mxu0 %v1325
        %1455 = vmatpush.msra.mxu0 %v1321
        %1456 = vmatpush.msra.mxu0 %v1317
        %1457 = vmatpush.msra.mxu0 %v1313
        %1458 = vmatmul.f32.gmra.mxu0 %v1375
        %v1459 = vpop.f32.mrf.mxu0
        %v1460 = vadd.f32 0.0, %v1459
        %1461 = vdwg.mxu0
        %v1462 = vadd.f32 %v1378, %v1400
        %v1463 = vadd.f32 %v1379, %v1420
        %v1464 = vadd.f32 %v1380, %v1440
        %v1465 = vadd.f32 %v1381, %v1460
        %v1466 = vmul.f32 %v1462, 0.5
        %v1467 = vtanh.pop %v1466
        %v1468 = vadd.f32 %v1467, 1.0
        %v1469 = vmul.f32 %v1468, 0.5
        %v1470 = vmul.f32 %v1463, 0.5
        %v1471 = vtanh.pop %v1470
        %v1472 = vadd.f32 %v1471, 1.0
        %v1473 = vmul.f32 %v1472, 0.5
        %v1474 = vtanh.pop %v1464
        %v1475 = vmul.f32 %v1465, 0.5
        %v1476 = vtanh.pop %v1475
        %v1477 = vadd.f32 %v1476, 1.0
        %v1478 = vmul.f32 %v1477, 0.5
        %v1479 = vmul.f32 %v1473, %v1377
        %v1480 = vmul.f32 %v1469, %v1474
        %v1481 = vadd.f32 %v1479, %v1480
        %v1482 = vtanh.pop %v1481
        %v1483 = vmul.f32 %v1478, %v1482
        %v1484 = vsel %vm745, %v1483, %v1375
        %v1485 = vsel %vm745, %v1481, %v1377
        %v1486 = vld [vmem:[%s749] sm:$0xff]
        %v1487 = vld [vmem:[%s749 + $0x8] sm:$0xff]
        %v1488 = vld [vmem:[%s749 + $0x10] sm:$0xff]
        %v1489 = vld [vmem:[%s749 + $0x18] sm:$0xff]
        %1490 = vmatpush.msra.mxu0 %v1370
        %1491 = vmatpush.msra.mxu0 %v1366
        %1492 = vmatpush.msra.mxu0 %v1362
        %1493 = vmatpush.msra.mxu0 %v1358
        %1494 = vmatpush.msra.mxu0 %v1354
        %1495 = vmatpush.msra.mxu0 %v1350
        %1496 = vmatpush.msra.mxu0 %v1346
        %1497 = vmatpush.msra.mxu0 %v1342
        %1498 = vmatpush.msra.mxu0 %v1338
        %1499 = vmatpush.msra.mxu0 %v1334
        %1500 = vmatpush.msra.mxu0 %v1330
        %1501 = vmatpush.msra.mxu0 %v1326
        %1502 = vmatpush.msra.mxu0 %v1322
        %1503 = vmatpush.msra.mxu0 %v1318
        %1504 = vmatpush.msra.mxu0 %v1314
        %1505 = vmatpush.msra.mxu0 %v1310
        %1506 = vmatmul.f32.gmra.mxu0 %v1484
        %v1507 = vpop.f32.mrf.mxu0
        %v1508 = vadd.f32 0.0, %v1507
        %1509 = vdwg.mxu0
        %1510 = vmatpush.msra.mxu0 %v1371
        %1511 = vmatpush.msra.mxu0 %v1367
        %1512 = vmatpush.msra.mxu0 %v1363
        %1513 = vmatpush.msra.mxu0 %v1359
        %1514 = vmatpush.msra.mxu0 %v1355
        %1515 = vmatpush.msra.mxu0 %v1351
        %1516 = vmatpush.msra.mxu0 %v1347
        %1517 = vmatpush.msra.mxu0 %v1343
        %1518 = vmatpush.msra.mxu0 %v1339
        %1519 = vmatpush.msra.mxu0 %v1335
        %1520 = vmatpush.msra.mxu0 %v1331
        %1521 = vmatpush.msra.mxu0 %v1327
        %1522 = vmatpush.msra.mxu0 %v1323
        %1523 = vmatpush.msra.mxu0 %v1319
        %1524 = vmatpush.msra.mxu0 %v1315
        %1525 = vmatpush.msra.mxu0 %v1311
        %1526 = vmatmul.f32.gmra.mxu0 %v1484
        %v1527 = vpop.f32.mrf.mxu0
        %v1528 = vadd.f32 0.0, %v1527
        %1529 = vdwg.mxu0
        %1530 = vmatpush.msra.mxu0 %v1372
        %1531 = vmatpush.msra.mxu0 %v1368
        %1532 = vmatpush.msra.mxu0 %v1364
        %1533 = vmatpush.msra.mxu0 %v1360
        %1534 = vmatpush.msra.mxu0 %v1356
        %1535 = vmatpush.msra.mxu0 %v1352
        %1536 = vmatpush.msra.mxu0 %v1348
        %1537 = vmatpush.msra.mxu0 %v1344
        %1538 = vmatpush.msra.mxu0 %v1340
        %1539 = vmatpush.msra.mxu0 %v1336
        %1540 = vmatpush.msra.mxu0 %v1332
        %1541 = vmatpush.msra.mxu0 %v1328
        %1542 = vmatpush.msra.mxu0 %v1324
        %1543 = vmatpush.msra.mxu0 %v1320
        %1544 = vmatpush.msra.mxu0 %v1316
        %1545 = vmatpush.msra.mxu0 %v1312
        %1546 = vmatmul.f32.gmra.mxu0 %v1484
        %v1547 = vpop.f32.mrf.mxu0
        %v1548 = vadd.f32 0.0, %v1547
        %1549 = vdwg.mxu0
        %1550 = vmatpush.msra.mxu0 %v1373
        %1551 = vmatpush.msra.mxu0 %v1369
        %1552 = vmatpush.msra.mxu0 %v1365
        %1553 = vmatpush.msra.mxu0 %v1361
        %1554 = vmatpush.msra.mxu0 %v1357
        %1555 = vmatpush.msra.mxu0 %v1353
        %1556 = vmatpush.msra.mxu0 %v1349
        %1557 = vmatpush.msra.mxu0 %v1345
        %1558 = vmatpush.msra.mxu0 %v1341
        %1559 = vmatpush.msra.mxu0 %v1337
        %1560 = vmatpush.msra.mxu0 %v1333
        %1561 = vmatpush.msra.mxu0 %v1329
        %1562 = vmatpush.msra.mxu0 %v1325
        %1563 = vmatpush.msra.mxu0 %v1321
        %1564 = vmatpush.msra.mxu0 %v1317
        %1565 = vmatpush.msra.mxu0 %v1313
        %1566 = vmatmul.f32.gmra.mxu0 %v1484
        %v1567 = vpop.f32.mrf.mxu0
        %v1568 = vadd.f32 0.0, %v1567
        %1569 = vdwg.mxu0
        %v1570 = vadd.f32 %v1486, %v1508
        %v1571 = vadd.f32 %v1487, %v1528
        %v1572 = vadd.f32 %v1488, %v1548
        %v1573 = vadd.f32 %v1489, %v1568
        %v1574 = vmul.f32 %v1570, 0.5
        %v1575 = vtanh.pop %v1574
        %v1576 = vadd.f32 %v1575, 1.0
        %v1577 = vmul.f32 %v1576, 0.5
        %v1578 = vmul.f32 %v1571, 0.5
        %v1579 = vtanh.pop %v1578
        %v1580 = vadd.f32 %v1579, 1.0
        %v1581 = vmul.f32 %v1580, 0.5
        %v1582 = vtanh.pop %v1572
        %v1583 = vmul.f32 %v1573, 0.5
        %v1584 = vtanh.pop %v1583
        %v1585 = vadd.f32 %v1584, 1.0
        %v1586 = vmul.f32 %v1585, 0.5
        %v1587 = vmul.f32 %v1581, %v1485
        %v1588 = vmul.f32 %v1577, %v1582
        %v1589 = vadd.f32 %v1587, %v1588
        %v1590 = vtanh.pop %v1589
        %v1591 = vmul.f32 %v1586, %v1590
        %v1592 = vsel %vm860, %v1591, %v1484
        %v1593 = vsel %vm860, %v1589, %v1485
        %v1594 = vld [vmem:[%s865] sm:$0xff]
        %v1595 = vld [vmem:[%s865 + $0x8] sm:$0xff]
        %v1596 = vld [vmem:[%s865 + $0x10] sm:$0xff]
        %v1597 = vld [vmem:[%s865 + $0x18] sm:$0xff]
        %1598 = vmatpush.msra.mxu0 %v1370
        %1599 = vmatpush.msra.mxu0 %v1366
        %1600 = vmatpush.msra.mxu0 %v1362
        %1601 = vmatpush.msra.mxu0 %v1358
        %1602 = vmatpush.msra.mxu0 %v1354
        %1603 = vmatpush.msra.mxu0 %v1350
        %1604 = vmatpush.msra.mxu0 %v1346
        %1605 = vmatpush.msra.mxu0 %v1342
        %1606 = vmatpush.msra.mxu0 %v1338
        %1607 = vmatpush.msra.mxu0 %v1334
        %1608 = vmatpush.msra.mxu0 %v1330
        %1609 = vmatpush.msra.mxu0 %v1326
        %1610 = vmatpush.msra.mxu0 %v1322
        %1611 = vmatpush.msra.mxu0 %v1318
        %1612 = vmatpush.msra.mxu0 %v1314
        %1613 = vmatpush.msra.mxu0 %v1310
        %1614 = vmatmul.f32.gmra.mxu0 %v1592
        %v1615 = vpop.f32.mrf.mxu0
        %v1616 = vadd.f32 0.0, %v1615
        %1617 = vdwg.mxu0
        %1618 = vmatpush.msra.mxu0 %v1371
        %1619 = vmatpush.msra.mxu0 %v1367
        %1620 = vmatpush.msra.mxu0 %v1363
        %1621 = vmatpush.msra.mxu0 %v1359
        %1622 = vmatpush.msra.mxu0 %v1355
        %1623 = vmatpush.msra.mxu0 %v1351
        %1624 = vmatpush.msra.mxu0 %v1347
        %1625 = vmatpush.msra.mxu0 %v1343
        %1626 = vmatpush.msra.mxu0 %v1339
        %1627 = vmatpush.msra.mxu0 %v1335
        %1628 = vmatpush.msra.mxu0 %v1331
        %1629 = vmatpush.msra.mxu0 %v1327
        %1630 = vmatpush.msra.mxu0 %v1323
        %1631 = vmatpush.msra.mxu0 %v1319
        %1632 = vmatpush.msra.mxu0 %v1315
        %1633 = vmatpush.msra.mxu0 %v1311
        %1634 = vmatmul.f32.gmra.mxu0 %v1592
        %v1635 = vpop.f32.mrf.mxu0
        %v1636 = vadd.f32 0.0, %v1635
        %1637 = vdwg.mxu0
        %1638 = vmatpush.msra.mxu0 %v1372
        %1639 = vmatpush.msra.mxu0 %v1368
        %1640 = vmatpush.msra.mxu0 %v1364
        %1641 = vmatpush.msra.mxu0 %v1360
        %1642 = vmatpush.msra.mxu0 %v1356
        %1643 = vmatpush.msra.mxu0 %v1352
        %1644 = vmatpush.msra.mxu0 %v1348
        %1645 = vmatpush.msra.mxu0 %v1344
        %1646 = vmatpush.msra.mxu0 %v1340
        %1647 = vmatpush.msra.mxu0 %v1336
        %1648 = vmatpush.msra.mxu0 %v1332
        %1649 = vmatpush.msra.mxu0 %v1328
        %1650 = vmatpush.msra.mxu0 %v1324
        %1651 = vmatpush.msra.mxu0 %v1320
        %1652 = vmatpush.msra.mxu0 %v1316
        %1653 = vmatpush.msra.mxu0 %v1312
        %1654 = vmatmul.f32.gmra.mxu0 %v1592
        %v1655 = vpop.f32.mrf.mxu0
        %v1656 = vadd.f32 0.0, %v1655
        %1657 = vdwg.mxu0
        %1658 = vmatpush.msra.mxu0 %v1373
        %1659 = vmatpush.msra.mxu0 %v1369
        %1660 = vmatpush.msra.mxu0 %v1365
        %1661 = vmatpush.msra.mxu0 %v1361
        %1662 = vmatpush.msra.mxu0 %v1357
        %1663 = vmatpush.msra.mxu0 %v1353
        %1664 = vmatpush.msra.mxu0 %v1349
        %1665 = vmatpush.msra.mxu0 %v1345
        %1666 = vmatpush.msra.mxu0 %v1341
        %1667 = vmatpush.msra.mxu0 %v1337
        %1668 = vmatpush.msra.mxu0 %v1333
        %1669 = vmatpush.msra.mxu0 %v1329
        %1670 = vmatpush.msra.mxu0 %v1325
        %1671 = vmatpush.msra.mxu0 %v1321
        %1672 = vmatpush.msra.mxu0 %v1317
        %1673 = vmatpush.msra.mxu0 %v1313
        %1674 = vmatmul.f32.gmra.mxu0 %v1592
        %v1675 = vpop.f32.mrf.mxu0
        %v1676 = vadd.f32 0.0, %v1675
        %1677 = vdwg.mxu0
        %v1678 = vadd.f32 %v1594, %v1616
        %v1679 = vadd.f32 %v1595, %v1636
        %v1680 = vadd.f32 %v1596, %v1656
        %v1681 = vadd.f32 %v1597, %v1676
        %v1682 = vmul.f32 %v1678, 0.5
        %v1683 = vtanh.pop %v1682
        %v1684 = vadd.f32 %v1683, 1.0
        %v1685 = vmul.f32 %v1684, 0.5
        %v1686 = vmul.f32 %v1679, 0.5
        %v1687 = vtanh.pop %v1686
        %v1688 = vadd.f32 %v1687, 1.0
        %v1689 = vmul.f32 %v1688, 0.5
        %v1690 = vtanh.pop %v1680
        %v1691 = vmul.f32 %v1681, 0.5
        %v1692 = vtanh.pop %v1691
        %v1693 = vadd.f32 %v1692, 1.0
        %v1694 = vmul.f32 %v1693, 0.5
        %v1695 = vmul.f32 %v1689, %v1593
        %v1696 = vmul.f32 %v1685, %v1690
        %v1697 = vadd.f32 %v1695, %v1696
        %v1698 = vtanh.pop %v1697
        %v1699 = vmul.f32 %v1694, %v1698
        %v1700 = vsel %vm976, %v1699, %v1592
        %v1701 = vsel %vm976, %v1697, %v1593
        %v1702 = vld [vmem:[%s981] sm:$0xff]
        %v1703 = vld [vmem:[%s981 + $0x8] sm:$0xff]
        %v1704 = vld [vmem:[%s981 + $0x10] sm:$0xff]
        %v1705 = vld [vmem:[%s981 + $0x18] sm:$0xff]
        %1706 = vmatpush.msra.mxu0 %v1370
        %1707 = vmatpush.msra.mxu0 %v1366
        %1708 = vmatpush.msra.mxu0 %v1362
        %1709 = vmatpush.msra.mxu0 %v1358
        %1710 = vmatpush.msra.mxu0 %v1354
        %1711 = vmatpush.msra.mxu0 %v1350
        %1712 = vmatpush.msra.mxu0 %v1346
        %1713 = vmatpush.msra.mxu0 %v1342
        %1714 = vmatpush.msra.mxu0 %v1338
        %1715 = vmatpush.msra.mxu0 %v1334
        %1716 = vmatpush.msra.mxu0 %v1330
        %1717 = vmatpush.msra.mxu0 %v1326
        %1718 = vmatpush.msra.mxu0 %v1322
        %1719 = vmatpush.msra.mxu0 %v1318
        %1720 = vmatpush.msra.mxu0 %v1314
        %1721 = vmatpush.msra.mxu0 %v1310
        %1722 = vmatmul.f32.gmra.mxu0 %v1700
        %v1723 = vpop.f32.mrf.mxu0
        %v1724 = vadd.f32 0.0, %v1723
        %1725 = vdwg.mxu0
        %1726 = vmatpush.msra.mxu0 %v1371
        %1727 = vmatpush.msra.mxu0 %v1367
        %1728 = vmatpush.msra.mxu0 %v1363
        %1729 = vmatpush.msra.mxu0 %v1359
        %1730 = vmatpush.msra.mxu0 %v1355
        %1731 = vmatpush.msra.mxu0 %v1351
        %1732 = vmatpush.msra.mxu0 %v1347
        %1733 = vmatpush.msra.mxu0 %v1343
        %1734 = vmatpush.msra.mxu0 %v1339
        %1735 = vmatpush.msra.mxu0 %v1335
        %1736 = vmatpush.msra.mxu0 %v1331
        %1737 = vmatpush.msra.mxu0 %v1327
        %1738 = vmatpush.msra.mxu0 %v1323
        %1739 = vmatpush.msra.mxu0 %v1319
        %1740 = vmatpush.msra.mxu0 %v1315
        %1741 = vmatpush.msra.mxu0 %v1311
        %1742 = vmatmul.f32.gmra.mxu0 %v1700
        %v1743 = vpop.f32.mrf.mxu0
        %v1744 = vadd.f32 0.0, %v1743
        %1745 = vdwg.mxu0
        %1746 = vmatpush.msra.mxu0 %v1372
        %1747 = vmatpush.msra.mxu0 %v1368
        %1748 = vmatpush.msra.mxu0 %v1364
        %1749 = vmatpush.msra.mxu0 %v1360
        %1750 = vmatpush.msra.mxu0 %v1356
        %1751 = vmatpush.msra.mxu0 %v1352
        %1752 = vmatpush.msra.mxu0 %v1348
        %1753 = vmatpush.msra.mxu0 %v1344
        %1754 = vmatpush.msra.mxu0 %v1340
        %1755 = vmatpush.msra.mxu0 %v1336
        %1756 = vmatpush.msra.mxu0 %v1332
        %1757 = vmatpush.msra.mxu0 %v1328
        %1758 = vmatpush.msra.mxu0 %v1324
        %1759 = vmatpush.msra.mxu0 %v1320
        %1760 = vmatpush.msra.mxu0 %v1316
        %1761 = vmatpush.msra.mxu0 %v1312
        %1762 = vmatmul.f32.gmra.mxu0 %v1700
        %v1763 = vpop.f32.mrf.mxu0
        %v1764 = vadd.f32 0.0, %v1763
        %1765 = vdwg.mxu0
        %1766 = vmatpush.msra.mxu0 %v1373
        %1767 = vmatpush.msra.mxu0 %v1369
        %1768 = vmatpush.msra.mxu0 %v1365
        %1769 = vmatpush.msra.mxu0 %v1361
        %1770 = vmatpush.msra.mxu0 %v1357
        %1771 = vmatpush.msra.mxu0 %v1353
        %1772 = vmatpush.msra.mxu0 %v1349
        %1773 = vmatpush.msra.mxu0 %v1345
        %1774 = vmatpush.msra.mxu0 %v1341
        %1775 = vmatpush.msra.mxu0 %v1337
        %1776 = vmatpush.msra.mxu0 %v1333
        %1777 = vmatpush.msra.mxu0 %v1329
        %1778 = vmatpush.msra.mxu0 %v1325
        %1779 = vmatpush.msra.mxu0 %v1321
        %1780 = vmatpush.msra.mxu0 %v1317
        %1781 = vmatpush.msra.mxu0 %v1313
        %1782 = vmatmul.f32.gmra.mxu0 %v1700
        %v1783 = vpop.f32.mrf.mxu0
        %v1784 = vadd.f32 0.0, %v1783
        %1785 = vdwg.mxu0
        %v1786 = vadd.f32 %v1702, %v1724
        %v1787 = vadd.f32 %v1703, %v1744
        %v1788 = vadd.f32 %v1704, %v1764
        %v1789 = vadd.f32 %v1705, %v1784
        %v1790 = vmul.f32 %v1786, 0.5
        %v1791 = vtanh.pop %v1790
        %v1792 = vadd.f32 %v1791, 1.0
        %v1793 = vmul.f32 %v1792, 0.5
        %v1794 = vmul.f32 %v1787, 0.5
        %v1795 = vtanh.pop %v1794
        %v1796 = vadd.f32 %v1795, 1.0
        %v1797 = vmul.f32 %v1796, 0.5
        %v1798 = vtanh.pop %v1788
        %v1799 = vmul.f32 %v1789, 0.5
        %v1800 = vtanh.pop %v1799
        %v1801 = vadd.f32 %v1800, 1.0
        %v1802 = vmul.f32 %v1801, 0.5
        %v1803 = vmul.f32 %v1797, %v1701
        %v1804 = vmul.f32 %v1793, %v1798
        %v1805 = vadd.f32 %v1803, %v1804
        %v1806 = vtanh.pop %v1805
        %v1807 = vmul.f32 %v1802, %v1806
        %v1808 = vsel %vm1092, %v1807, %v1700
        %v1809 = vsel %vm1092, %v1805, %v1701
        %1810 = vst [vmem:[%s1374] sm:$0xff] %v1808
        %1811 = vst [vmem:[%s1376] sm:$0xff] %v1809
        // Predicated region
        $region69: #{tpu_custom_call.1} parent=43 // pred_check
          %p1812 = pneg %p170
        $region70: #{tpu_custom_call.1} parent=43 // pred_check_branch
          %1814 = sbr.rel (%p1812) target = $region72
        $region71: #{tpu_custom_call.1} parent=43 // pred_region
          %1816 = vsyncadd [#allocation6], 0
          %s1817 = sshll.u32 [#allocation13], 4
          %s1818 = int_to_ptr.vmem [resolvable:$true] %s1817
          %s1819 = sshll.u32 %s6, 4
          %s1820 = int_to_ptr.hbm [resolvable:$true] %s1819
          %1825 = dma.vmem_to_hbm [thread:$0]  %s1818, 256, %s1820, [#allocation6], 128, 128, 8
        $region72: #{tpu_custom_call.1} parent=43 // pred_fallthru
          _
        // Predicated region
        $region73: #{tpu_custom_call.1} parent=43 // pred_check
          %p1826 = pneg %p191
        $region74: #{tpu_custom_call.1} parent=43 // pred_check_branch
          %1828 = sbr.rel (%p1826) target = $region76
        $region75: #{tpu_custom_call.1} parent=43 // pred_region
          %1830 = vsyncadd [#allocation15], 0
          %s1831 = sshll.u32 [#allocation14], 4
          %s1832 = int_to_ptr.vmem [resolvable:$true] %s1831
          %s1833 = sshll.u32 %s7, 4
          %s1834 = int_to_ptr.hbm [resolvable:$true] %s1833
          %1839 = dma.vmem_to_hbm [thread:$0]  %s1832, 256, %s1834, [#allocation15], 128, 128, 8
        $region76: #{tpu_custom_call.1} parent=43 // pred_fallthru
          _
        // Predicated region
        $region77: #{tpu_custom_call.1} parent=43 // pred_check
          %p1840 = pneg %p170
        $region78: #{tpu_custom_call.1} parent=43 // pred_check_branch
          %1842 = sbr.rel (%p1840) target = $region80
        $region79: #{tpu_custom_call.1} parent=43 // pred_region
          %1844 = dma.done [#allocation6], 256
        $region80: #{tpu_custom_call.1} parent=43 // pred_fallthru
          _
        // Predicated region
        $region81: #{tpu_custom_call.1} parent=43 // pred_check
          %p1845 = pneg %p191
        $region82: #{tpu_custom_call.1} parent=43 // pred_check_branch
          %1847 = sbr.rel (%p1845) target = $region84
        $region83: #{tpu_custom_call.1} parent=43 // pred_region
          %1849 = dma.done [#allocation15], 256
        $region84: #{tpu_custom_call.1} parent=43 // pred_fallthru
          _
      $region44: #{tpu_custom_call.1} parent=5 // pred_fallthru
        _
      %p1850 = scmp.le.s32.totalorder 2, %s21
      // Predicated region
      $region85: #{tpu_custom_call.1} parent=5 // pred_check
        %p1851 = pneg %p1850
      $region86: #{tpu_custom_call.1} parent=5 // pred_check_branch
        %1853 = sbr.rel (%p1851) target = $region88
      $region87: #{tpu_custom_call.1} parent=5 // pred_region
        %s1854 = ssub.s32 %s21, 2
      $region88: #{tpu_custom_call.1} parent=5 // pred_fallthru
        _
    $region6: #{tpu_custom_call.1} parent=1 // loop_footer
      %s25 = sadd.s32 1, %s21
    $region7: #{tpu_custom_call.1} parent=1 // loop_footer_branch
      %20 = sbr.rel target = $region3
    $region8: #{tpu_custom_call.1} parent=1 // loop_exit
      _
    %1855 = vsyncpa [#allocation5], 1
    %s1856 = scalar_lea.sflag [#allocation5], 1
    %1857 = vsyncpa %s1856, 1
    %1858 = vsyncpa [#allocation8], 1
    %1859 = vsyncpa [#allocation11], 1
    %1860 = vsyncpa [#allocation6], 1
    %s1861 = scalar_lea.sflag [#allocation6], 1
    %1862 = vsyncpa %s1861, 1
    %1863 = vsyncpa [#allocation15], 1

</llo_original>
